<compile_context>
chip_gen: v7x
topology: tpu7x:2x2x1
jax: 0.10.0
libtpu: 0.0.40
codegen_flags: <defaults>
</compile_context>

<pallas_src>
import jax
import jax.numpy as jnp
from jax.experimental import pallas as pl
from jax.experimental.pallas import tpu as pltpu

IN_FULL = 1000       # declared model input width
IN_SLICE = 306       # forward() uses x[:, :306]
IN_PAD = 384         # contraction dim padded to a multiple of 128 (zero weight rows)
HIDDEN = 1000
HIDDEN_PAD = 1024    # hidden dim padded to a multiple of 128
NUM_CLASSES = 10     # step_out_class_num (small synthetic choice)
OUT_PAD = 128        # lane-dense output width; wrapper slices [:, :NUM_CLASSES]
BN_EPS = 1e-5


def _mlp_kernel(x_ref, w1_ref, b1_ref, w2_ref, b2_ref, o_ref):
    # x_ref: [TB, IN_PAD] f32 window of the full x; cast to bf16 at the MXU feed.
    x = x_ref[...].astype(jnp.bfloat16)
    h = jnp.dot(x, w1_ref[...], preferred_element_type=jnp.float32)
    h = jnp.maximum(h + b1_ref[...], 0.0)                        # f32 bias + ReLU

    # Linear(1000 -> num_classes) + sigmoid, lane-dense [TB, OUT_PAD] output.
    y = jnp.dot(h.astype(jnp.bfloat16), w2_ref[...],
                preferred_element_type=jnp.float32) + b2_ref[...]
    o_ref[...] = jax.nn.sigmoid(y)


def prepare_params(p):
    """One-time parameter prep: fold eval-mode BN into Linear1, zero-pad to
    MXU/lane-friendly shapes, cast weights to bf16 (kernel accumulates in f32)."""
    scale = p["gamma"] * jax.lax.rsqrt(p["var"] + BN_EPS)            # [1, HIDDEN]
    w1_f = p["w1"] * scale                                           # per-output-col scale
    b1_f = (p["b1"] - p["mean"]) * scale + p["beta"]

    w1 = jnp.zeros((IN_PAD, HIDDEN_PAD), jnp.float32).at[:IN_SLICE, :HIDDEN].set(w1_f)
    b1 = jnp.zeros((1, HIDDEN_PAD), jnp.float32).at[:, :HIDDEN].set(b1_f)
    w2 = jnp.zeros((HIDDEN_PAD, OUT_PAD), jnp.float32).at[:HIDDEN, :NUM_CLASSES].set(p["w2"])
    b2 = jnp.zeros((1, OUT_PAD), jnp.float32).at[:, :NUM_CLASSES].set(p["b2"])

    return dict(w1=w1.astype(jnp.bfloat16), b1=b1,
                w2=w2.astype(jnp.bfloat16), b2=b2)


def _choose_tb(B):
    """Batch tile: minimal padding waste, then >=2 grid steps (v7x megacore),
    then the largest tile (amortize per-grid-step overhead).  f32 x blocks, so a
    multiple of 8 rows is the native (8,128) sublane granularity."""
    b8 = max(8, -(-B // 8) * 8)
    if b8 <= 256:
        # Tiny batch: split into 2 tiles when it costs no padding, else one tile.
        return b8 // 2 if (b8 % 16 == 0 and b8 >= 16) else b8

    def key(tb):
        b_pad = -(-b8 // tb) * tb
        grid = b_pad // tb
        return (b_pad - B, 0 if grid >= 2 else 1, -tb)

    return min((128, 256, 512, 1024), key=key)


def mlp_forward(x, prepped):
    """x: [B, >=IN_PAD] float32 -> [B, NUM_CLASSES] float32 (prepped = prepare_params(...))."""
    B = x.shape[0]
    TB = _choose_tb(B)
    B_pad = pl.cdiv(B, TB) * TB

    # No wrapper-side slice/cast: the kernel's BlockSpec reads only cols [0, IN_PAD).
    if x.shape[1] < IN_PAD:                       # robustness; extra cols hit zero W1 rows
        x = jnp.pad(x, ((0, 0), (0, IN_PAD - x.shape[1])))
    if B_pad != B:
        x = jnp.pad(x, ((0, B_pad - B), (0, 0)))

    grid = (B_pad // TB,)
    cost = pl.CostEstimate(
        flops=2 * B_pad * (IN_PAD * HIDDEN_PAD + HIDDEN_PAD * OUT_PAD),
        transcendentals=B_pad * OUT_PAD,
        bytes_accessed=(B_pad * IN_PAD * 4
                        + IN_PAD * HIDDEN_PAD * 2 + HIDDEN_PAD * OUT_PAD * 2
                        + (HIDDEN_PAD + OUT_PAD) * 4
                        + B_pad * OUT_PAD * 4))

    out = pl.pallas_call(
        _mlp_kernel,
        out_shape=jax.ShapeDtypeStruct((B_pad, OUT_PAD), jnp.float32),
        grid=grid,
        in_specs=[
            pl.BlockSpec((TB, IN_PAD), lambda i: (i, 0)),             # x window (f32, pipelined)
            pl.BlockSpec((IN_PAD, HIDDEN_PAD), lambda i: (0, 0)),     # W1 resident (const idx)
            pl.BlockSpec((1, HIDDEN_PAD), lambda i: (0, 0)),          # folded bias1
            pl.BlockSpec((HIDDEN_PAD, OUT_PAD), lambda i: (0, 0)),    # W2 resident
            pl.BlockSpec((1, OUT_PAD), lambda i: (0, 0)),             # bias2
        ],
        out_specs=pl.BlockSpec((TB, OUT_PAD), lambda i: (i, 0)),
        compiler_params=pltpu.CompilerParams(
            dimension_semantics=("parallel",)),
        cost_estimate=cost,
    )(x, prepped["w1"], prepped["b1"], prepped["w2"], prepped["b2"])

    return out[:B, :NUM_CLASSES]


def init_params(key):
    ks = jax.random.split(key, 6)
    return dict(
        w1=jax.random.normal(ks[0], (IN_SLICE, HIDDEN), jnp.float32) * 0.02,
        b1=jax.random.normal(ks[1], (1, HIDDEN), jnp.float32) * 0.01,
        gamma=jnp.ones((1, HIDDEN), jnp.float32),
        beta=jnp.zeros((1, HIDDEN), jnp.float32),
        mean=jax.random.normal(ks[2], (1, HIDDEN), jnp.float32) * 0.01,
        var=1.0 + 0.1 * jax.random.uniform(ks[3], (1, HIDDEN), jnp.float32),
        w2=jax.random.normal(ks[4], (HIDDEN, NUM_CLASSES), jnp.float32) * 0.02,
        b2=jax.random.normal(ks[5], (1, NUM_CLASSES), jnp.float32) * 0.01,
    )


def _reference(x, params):
    """Pure-JAX f32 reference of the original eval-mode forward."""
    x306 = x[:, :IN_SLICE]
    h = x306 @ params["w1"] + params["b1"]
    h = (h - params["mean"]) * jax.lax.rsqrt(params["var"] + BN_EPS) * params["gamma"] + params["beta"]
    h = jnp.maximum(h, 0.0)
    y = h @ params["w2"] + params["b2"]
    return jax.nn.sigmoid(y)


if __name__ == "__main__":
    key = jax.random.PRNGKey(0)
    k_x, k_p = jax.random.split(key)

    B = 8
    x = jax.random.normal(k_x, (B, IN_FULL), jnp.float32)
    params = init_params(k_p)
    prepped = jax.tree_util.tree_map(jax.block_until_ready, prepare_params(params))

    out = jax.jit(mlp_forward)(x, prepped)
    out = jax.block_until_ready(out)

    ref = _reference(x, params)
    assert out.shape == (B, NUM_CLASSES)
    # bf16 weights/activations with f32 accumulation: small, bounded deviation vs f32 ref.
    assert jnp.allclose(out, ref, atol=1e-2, rtol=0), "mismatch vs pure-JAX reference"

    print("KERNEL_OK")
</pallas_src>

<mosaic_0001>
module attributes {stable_mosaic.version = 11 : i64} {
  func.func @_mlp_kernel(%arg0: i32, %arg1: memref<8x384xf32, #tpu.memory_space<vmem>>, %arg2: memref<384x1024xbf16, #tpu.memory_space<vmem>>, %arg3: memref<1x1024xf32, #tpu.memory_space<vmem>>, %arg4: memref<1024x128xbf16, #tpu.memory_space<vmem>>, %arg5: memref<1x128xf32, #tpu.memory_space<vmem>>, %arg6: memref<8x128xf32, #tpu.memory_space<vmem>>) attributes {dimension_semantics = [#tpu.dimension_semantics<parallel>], iteration_bounds = array<i64: 1>, scalar_prefetch = 0 : i64, scratch_operands = 0 : i64, tpu.core_type = #tpu.core_type<tc>, window_params = [{transform_indices = @transform_0, window_bounds = array<i64: 8, 384>}, {pipeline_mode = #tpu.pipeline_mode<synchronous>, transform_indices = @transform_1, window_bounds = array<i64: 384, 1024>}, {pipeline_mode = #tpu.pipeline_mode<synchronous>, transform_indices = @transform_2, window_bounds = array<i64: 1, 1024>}, {pipeline_mode = #tpu.pipeline_mode<synchronous>, transform_indices = @transform_3, window_bounds = array<i64: 1024, 128>}, {pipeline_mode = #tpu.pipeline_mode<synchronous>, transform_indices = @transform_4, window_bounds = array<i64: 1, 128>}, {transform_indices = @transform_5, window_bounds = array<i64: 8, 128>}]} {
    %c0 = arith.constant 0 : index
    %c0_0 = arith.constant 0 : index
    %0 = vector.load %arg1[%c0, %c0_0] : memref<8x384xf32, #tpu.memory_space<vmem>>, vector<8x384xf32>
    %1 = arith.truncf %0 : vector<8x384xf32> to vector<8x384xbf16>
    %c0_1 = arith.constant 0 : index
    %c0_2 = arith.constant 0 : index
    %2 = vector.load %arg2[%c0_1, %c0_2] : memref<384x1024xbf16, #tpu.memory_space<vmem>>, vector<384x1024xbf16>
    %cst = arith.constant dense<0.000000e+00> : vector<8x1024xf32>
    %3 = tpu.matmul %1, %2, %cst {dimension_numbers = #tpu.dot_dimension_numbers<[1], [0], [0], [1], [0, 0, 1, 1], [], []>} : vector<8x384xbf16>, vector<384x1024xbf16>, vector<8x1024xf32> -> vector<8x1024xf32>
    %c0_3 = arith.constant 0 : index
    %c0_4 = arith.constant 0 : index
    %4 = vector.load %arg3[%c0_3, %c0_4] : memref<1x1024xf32, #tpu.memory_space<vmem>>, vector<1x1024xf32>
    %5 = vector.broadcast %4 : vector<1x1024xf32> to vector<8x1024xf32>
    %6 = arith.addf %3, %5 : vector<8x1024xf32>
    %cst_5 = arith.constant 0.000000e+00 : f32
    %7 = vector.broadcast %cst_5 : f32 to vector<8x1024xf32>
    %8 = arith.maximumf %6, %7 : vector<8x1024xf32>
    %9 = arith.truncf %8 : vector<8x1024xf32> to vector<8x1024xbf16>
    %c0_6 = arith.constant 0 : index
    %c0_7 = arith.constant 0 : index
    %10 = vector.load %arg4[%c0_6, %c0_7] : memref<1024x128xbf16, #tpu.memory_space<vmem>>, vector<1024x128xbf16>
    %cst_8 = arith.constant dense<0.000000e+00> : vector<8x128xf32>
    %11 = tpu.matmul %9, %10, %cst_8 {dimension_numbers = #tpu.dot_dimension_numbers<[1], [0], [0], [1], [0, 0, 1, 1], [], []>} : vector<8x1024xbf16>, vector<1024x128xbf16>, vector<8x128xf32> -> vector<8x128xf32>
    %c0_9 = arith.constant 0 : index
    %c0_10 = arith.constant 0 : index
    %12 = vector.load %arg5[%c0_9, %c0_10] : memref<1x128xf32, #tpu.memory_space<vmem>>, vector<1x128xf32>
    %13 = vector.broadcast %12 : vector<1x128xf32> to vector<8x128xf32>
    %14 = arith.addf %11, %13 : vector<8x128xf32>
    %15 = arith.negf %14 : vector<8x128xf32>
    %16 = math.exp %15 : vector<8x128xf32>
    %cst_11 = arith.constant 1.000000e+00 : f32
    %17 = vector.broadcast %cst_11 : f32 to vector<8x128xf32>
    %18 = arith.addf %17, %16 : vector<8x128xf32>
    %19 = arith.divf %17, %18 : vector<8x128xf32>
    %c0_12 = arith.constant 0 : index
    %c0_13 = arith.constant 0 : index
    %20 = vector.load %arg6[%c0_12, %c0_13] : memref<8x128xf32, #tpu.memory_space<vmem>>, vector<8x128xf32>
    tpu.vector_store %arg6[%c0_12, %c0_13], %19 {strides = array<i32>} : memref<8x128xf32, #tpu.memory_space<vmem>>, vector<8x128xf32>,
    return
  }
  func.func @transform_0(%arg0: i32) -> (i32, i32) {
    %c0_i32 = arith.constant 0 : i32
    %c0_i32_0 = arith.constant 0 : i32
    return %arg0, %c0_i32 : i32, i32
  }
  func.func @transform_1(%arg0: i32) -> (i32, i32) {
    %c0_i32 = arith.constant 0 : i32
    %c0_i32_0 = arith.constant 0 : i32
    %c0_i32_1 = arith.constant 0 : i32
    return %c0_i32, %c0_i32_0 : i32, i32
  }
  func.func @transform_2(%arg0: i32) -> (i32, i32) {
    %c0_i32 = arith.constant 0 : i32
    %c0_i32_0 = arith.constant 0 : i32
    %c0_i32_1 = arith.constant 0 : i32
    return %c0_i32, %c0_i32_0 : i32, i32
  }
  func.func @transform_3(%arg0: i32) -> (i32, i32) {
    %c0_i32 = arith.constant 0 : i32
    %c0_i32_0 = arith.constant 0 : i32
    %c0_i32_1 = arith.constant 0 : i32
    return %c0_i32, %c0_i32_0 : i32, i32
  }
  func.func @transform_4(%arg0: i32) -> (i32, i32) {
    %c0_i32 = arith.constant 0 : i32
    %c0_i32_0 = arith.constant 0 : i32
    %c0_i32_1 = arith.constant 0 : i32
    return %c0_i32, %c0_i32_0 : i32, i32
  }
  func.func @transform_5(%arg0: i32) -> (i32, i32) {
    %c0_i32 = arith.constant 0 : i32
    %c0_i32_0 = arith.constant 0 : i32
    return %arg0, %c0_i32 : i32, i32
  }
}

</mosaic_0001>

<llo_original>
// kernel: mlp_forward.1
$region0: #{mlp_forward.1}
  #allocation0 [shape = 'u32[]', space=smem, size = 0x4, offset = 0x4, fixed_abs, tag = 'smem constant byte address 0x4 - core index']
  #allocation1 [shape = 'u32[144,128]{1,0:T(1,128)}', space=vmem, size = 0x12000, scoped, tag = 'internal scratch']
  %s0 = inlined_call_operand.hbm [shape: f32[8,1000], index: 0, kind: input, shape index: {}]
  %s1 = inlined_call_operand.hbm [shape: bf16[384,1024], index: 1, kind: input, shape index: {}]
  %s2 = inlined_call_operand.hbm [shape: f32[1,1024], index: 2, kind: input, shape index: {}]
  %s3 = inlined_call_operand.hbm [shape: bf16[1024,128], index: 3, kind: input, shape index: {}]
  %s4 = inlined_call_operand.vmem [shape: f32[1,128], index: 4, kind: input, shape index: {}]
  %s5 = inlined_call_operand.hbm [shape: f32[8,128], index: 5, kind: output, shape index: {}]
  %s6 = sld [smem:[#allocation0]]
  $region46: #{mlp_forward.1} parent=0
    _
  %s8 = ssub.s32 1, %s6
  %s9 = scalar_select 0, %s8, %s6
  $region1: #{mlp_forward.1} parent=0
    #allocation2 [shape = 'u8[12288]{0}', space=vmem, size = 0x3000, scoped, tag = 'input window, operand 0, single buffered']
    #allocation3 [shape = 's32[1]{0}', space=sflag, size = 0x4, scoped, tag = 'scoped memory for mlp_forward.1']
    #allocation4 [shape = 's32[1]{0}', space=sflag, size = 0x4, scoped, tag = 'scoped memory for mlp_forward.1']
    #allocation5 [shape = 'u8[786432]{0}', space=vmem, size = 0xc0000, scoped, tag = 'input window, operand 1, single buffered']
    #allocation6 [shape = 's32[1]{0}', space=sflag, size = 0x4, scoped, tag = 'scoped memory for mlp_forward.1']
    #allocation7 [shape = 'u8[4096]{0}', space=vmem, size = 0x1000, scoped, tag = 'input window, operand 2, single buffered']
    #allocation8 [shape = 'u8[262144]{0}', space=vmem, size = 0x40000, scoped, tag = 'input window, operand 3, single buffered']
    #allocation9 [shape = 's32[1]{0}', space=sflag, size = 0x4, scoped, tag = 'scoped memory for mlp_forward.1']
    #allocation10 [shape = 'u8[4096]{0}', space=vmem, size = 0x1000, scoped, tag = 'output window, operand 0, single buffered']
    %10 = vsyncpa [#allocation3], 0
    %11 = vsyncpa [#allocation6], 0
    %12 = vsyncpa [#allocation9], 0
    %13 = vsyncpa [#allocation4], 0
    // Predicated region
    $region2: #{mlp_forward.1} parent=1 // pred_check
      _
    $region3: #{mlp_forward.1} parent=1 // pred_check_branch
      %15 = sbr.rel (0) target = $region5
    $region4: #{mlp_forward.1} parent=1 // pred_region
      %s17 = ssub.s32 384, 384
      %18 = vsyncadd [#allocation3], %s17
      %s20 = sshll.u32 [#allocation2], 4
      %s21 = int_to_ptr.vmem [resolvable:$true] %s20
      %23 = dma.hbm_to_vmem [thread:$0]  %s0, 384, %s21, [#allocation3]
    $region5: #{mlp_forward.1} parent=1 // pred_fallthru
      _
    // Predicated region
    $region6: #{mlp_forward.1} parent=1 // pred_check
      _
    $region7: #{mlp_forward.1} parent=1 // pred_check_branch
      %25 = sbr.rel (0) target = $region9
    $region8: #{mlp_forward.1} parent=1 // pred_region
      %s27 = ssub.s32 24576, 24576
      %28 = vsyncadd [#allocation6], %s27
      %s29 = sshll.u32 [#allocation5], 4
      %s30 = int_to_ptr.vmem [resolvable:$true] %s29
      %35 = dma.hbm_to_vmem [thread:$0]  %s1, 24576, %s30, [#allocation6], 512, 512, 32
    $region9: #{mlp_forward.1} parent=1 // pred_fallthru
      _
    // Predicated region
    $region10: #{mlp_forward.1} parent=1 // pred_check
      _
    $region11: #{mlp_forward.1} parent=1 // pred_check_branch
      %37 = sbr.rel (0) target = $region13
    $region12: #{mlp_forward.1} parent=1 // pred_region
      %s39 = ssub.s32 128, 128
      %40 = vsyncadd [#allocation6], %s39
      %s42 = sshll.u32 [#allocation7], 4
      %s43 = int_to_ptr.vmem [resolvable:$true] %s42
      %45 = dma.hbm_to_vmem [thread:$0]  %s2, 128, %s43, [#allocation6]
    $region13: #{mlp_forward.1} parent=1 // pred_fallthru
      _
    // Predicated region
    $region14: #{mlp_forward.1} parent=1 // pred_check
      _
    $region15: #{mlp_forward.1} parent=1 // pred_check_branch
      %47 = sbr.rel (0) target = $region17
    $region16: #{mlp_forward.1} parent=1 // pred_region
      %s49 = ssub.s32 8192, 8192
      %50 = vsyncadd [#allocation9], %s49
      %s51 = sshll.u32 [#allocation8], 4
      %s52 = int_to_ptr.vmem [resolvable:$true] %s51
      %57 = dma.hbm_to_vmem [thread:$0]  %s3, 8192, %s52, [#allocation9], 64, 64, 4
    $region17: #{mlp_forward.1} parent=1 // pred_fallthru
      _
    // Predicated region
    $region18: #{mlp_forward.1} parent=1 // pred_check
      _
    $region19: #{mlp_forward.1} parent=1 // pred_check_branch
      %59 = sbr.rel (0) target = $region21
    $region20: #{mlp_forward.1} parent=1 // pred_region
      _
    $region21: #{mlp_forward.1} parent=1 // pred_fallthru
      _
    // Predicated region
    $region22: #{mlp_forward.1} parent=1 // pred_check
      _
    $region23: #{mlp_forward.1} parent=1 // pred_check_branch
      %61 = sbr.rel (0) target = $region25
    $region24: #{mlp_forward.1} parent=1 // pred_region
      %62 = dma.done [#allocation3], 384
    $region25: #{mlp_forward.1} parent=1 // pred_fallthru
      _
    // Predicated region
    $region26: #{mlp_forward.1} parent=1 // pred_check
      _
    $region27: #{mlp_forward.1} parent=1 // pred_check_branch
      %64 = sbr.rel (0) target = $region29
    $region28: #{mlp_forward.1} parent=1 // pred_region
      %65 = dma.done [#allocation6], 24576
    $region29: #{mlp_forward.1} parent=1 // pred_fallthru
      _
    // Predicated region
    $region30: #{mlp_forward.1} parent=1 // pred_check
      _
    $region31: #{mlp_forward.1} parent=1 // pred_check_branch
      %67 = sbr.rel (0) target = $region33
    $region32: #{mlp_forward.1} parent=1 // pred_region
      %68 = dma.done [#allocation6], 128
    $region33: #{mlp_forward.1} parent=1 // pred_fallthru
      _
    // Predicated region
    $region34: #{mlp_forward.1} parent=1 // pred_check
      _
    $region35: #{mlp_forward.1} parent=1 // pred_check_branch
      %70 = sbr.rel (0) target = $region37
    $region36: #{mlp_forward.1} parent=1 // pred_region
      %71 = dma.done [#allocation9], 8192
    $region37: #{mlp_forward.1} parent=1 // pred_fallthru
      _
    %v73 = vld [vmem:[#allocation2] sm:$0xff]
    %v74 = vld [vmem:[#allocation2 + $0x8] sm:$0xff]
    %v75 = vld [vmem:[#allocation2 + $0x10] sm:$0xff]
    %v76 = vpack.c.bf16 %v73, %v73
    %v77 = vpack.c.bf16 %v74, %v74
    %v78 = vpack.c.bf16 %v75, %v75
    %v79 = vld [vmem:[#allocation5] sm:$0xff]
    %v80 = vld [vmem:[#allocation5 + $0x8] sm:$0xff]
    %v81 = vld [vmem:[#allocation5 + $0x10] sm:$0xff]
    %v82 = vld [vmem:[#allocation5 + $0x18] sm:$0xff]
    %v83 = vld [vmem:[#allocation5 + $0x20] sm:$0xff]
    %v84 = vld [vmem:[#allocation5 + $0x28] sm:$0xff]
    %v85 = vld [vmem:[#allocation5 + $0x30] sm:$0xff]
    %v86 = vld [vmem:[#allocation5 + $0x38] sm:$0xff]
    %v87 = vld [vmem:[#allocation5 + $0x40] sm:$0xff]
    %v88 = vld [vmem:[#allocation5 + $0x48] sm:$0xff]
    %v89 = vld [vmem:[#allocation5 + $0x50] sm:$0xff]
    %v90 = vld [vmem:[#allocation5 + $0x58] sm:$0xff]
    %v91 = vld [vmem:[#allocation5 + $0x60] sm:$0xff]
    %v92 = vld [vmem:[#allocation5 + $0x68] sm:$0xff]
    %v93 = vld [vmem:[#allocation5 + $0x70] sm:$0xff]
    %v94 = vld [vmem:[#allocation5 + $0x78] sm:$0xff]
    %v95 = vld [vmem:[#allocation5 + $0x80] sm:$0xff]
    %v96 = vld [vmem:[#allocation5 + $0x88] sm:$0xff]
    %v97 = vld [vmem:[#allocation5 + $0x90] sm:$0xff]
    %v98 = vld [vmem:[#allocation5 + $0x98] sm:$0xff]
    %v99 = vld [vmem:[#allocation5 + $0xa0] sm:$0xff]
    %v100 = vld [vmem:[#allocation5 + $0xa8] sm:$0xff]
    %v101 = vld [vmem:[#allocation5 + $0xb0] sm:$0xff]
    %v102 = vld [vmem:[#allocation5 + $0xb8] sm:$0xff]
    %v103 = vld [vmem:[#allocation5 + $0xc0] sm:$0xff]
    %v104 = vld [vmem:[#allocation5 + $0xc8] sm:$0xff]
    %v105 = vld [vmem:[#allocation5 + $0xd0] sm:$0xff]
    %v106 = vld [vmem:[#allocation5 + $0xd8] sm:$0xff]
    %v107 = vld [vmem:[#allocation5 + $0xe0] sm:$0xff]
    %v108 = vld [vmem:[#allocation5 + $0xe8] sm:$0xff]
    %v109 = vld [vmem:[#allocation5 + $0xf0] sm:$0xff]
    %v110 = vld [vmem:[#allocation5 + $0xf8] sm:$0xff]
    %v111 = vld [vmem:[#allocation5 + $0x100] sm:$0xff]
    %v112 = vld [vmem:[#allocation5 + $0x108] sm:$0xff]
    %v113 = vld [vmem:[#allocation5 + $0x110] sm:$0xff]
    %v114 = vld [vmem:[#allocation5 + $0x118] sm:$0xff]
    %v115 = vld [vmem:[#allocation5 + $0x120] sm:$0xff]
    %v116 = vld [vmem:[#allocation5 + $0x128] sm:$0xff]
    %v117 = vld [vmem:[#allocation5 + $0x130] sm:$0xff]
    %v118 = vld [vmem:[#allocation5 + $0x138] sm:$0xff]
    %v119 = vld [vmem:[#allocation5 + $0x140] sm:$0xff]
    %v120 = vld [vmem:[#allocation5 + $0x148] sm:$0xff]
    %v121 = vld [vmem:[#allocation5 + $0x150] sm:$0xff]
    %v122 = vld [vmem:[#allocation5 + $0x158] sm:$0xff]
    %v123 = vld [vmem:[#allocation5 + $0x160] sm:$0xff]
    %v124 = vld [vmem:[#allocation5 + $0x168] sm:$0xff]
    %v125 = vld [vmem:[#allocation5 + $0x170] sm:$0xff]
    %v126 = vld [vmem:[#allocation5 + $0x178] sm:$0xff]
    %v127 = vld [vmem:[#allocation5 + $0x180] sm:$0xff]
    %v128 = vld [vmem:[#allocation5 + $0x188] sm:$0xff]
    %v129 = vld [vmem:[#allocation5 + $0x190] sm:$0xff]
    %v130 = vld [vmem:[#allocation5 + $0x198] sm:$0xff]
    %v131 = vld [vmem:[#allocation5 + $0x1a0] sm:$0xff]
    %v132 = vld [vmem:[#allocation5 + $0x1a8] sm:$0xff]
    %v133 = vld [vmem:[#allocation5 + $0x1b0] sm:$0xff]
    %v134 = vld [vmem:[#allocation5 + $0x1b8] sm:$0xff]
    %v135 = vld [vmem:[#allocation5 + $0x1c0] sm:$0xff]
    %v136 = vld [vmem:[#allocation5 + $0x1c8] sm:$0xff]
    %v137 = vld [vmem:[#allocation5 + $0x1d0] sm:$0xff]
    %v138 = vld [vmem:[#allocation5 + $0x1d8] sm:$0xff]
    %v139 = vld [vmem:[#allocation5 + $0x1e0] sm:$0xff]
    %v140 = vld [vmem:[#allocation5 + $0x1e8] sm:$0xff]
    %v141 = vld [vmem:[#allocation5 + $0x1f0] sm:$0xff]
    %v142 = vld [vmem:[#allocation5 + $0x1f8] sm:$0xff]
    %v143 = vld [vmem:[#allocation5 + $0x200] sm:$0xff]
    %v144 = vld [vmem:[#allocation5 + $0x208] sm:$0xff]
    %v145 = vld [vmem:[#allocation5 + $0x210] sm:$0xff]
    %v146 = vld [vmem:[#allocation5 + $0x218] sm:$0xff]
    %v147 = vld [vmem:[#allocation5 + $0x220] sm:$0xff]
    %v148 = vld [vmem:[#allocation5 + $0x228] sm:$0xff]
    %v149 = vld [vmem:[#allocation5 + $0x230] sm:$0xff]
    %v150 = vld [vmem:[#allocation5 + $0x238] sm:$0xff]
    %v151 = vld [vmem:[#allocation5 + $0x240] sm:$0xff]
    %v152 = vld [vmem:[#allocation5 + $0x248] sm:$0xff]
    %v153 = vld [vmem:[#allocation5 + $0x250] sm:$0xff]
    %v154 = vld [vmem:[#allocation5 + $0x258] sm:$0xff]
    %v155 = vld [vmem:[#allocation5 + $0x260] sm:$0xff]
    %v156 = vld [vmem:[#allocation5 + $0x268] sm:$0xff]
    %v157 = vld [vmem:[#allocation5 + $0x270] sm:$0xff]
    %v158 = vld [vmem:[#allocation5 + $0x278] sm:$0xff]
    %v159 = vld [vmem:[#allocation5 + $0x280] sm:$0xff]
    %v160 = vld [vmem:[#allocation5 + $0x288] sm:$0xff]
    %v161 = vld [vmem:[#allocation5 + $0x290] sm:$0xff]
    %v162 = vld [vmem:[#allocation5 + $0x298] sm:$0xff]
    %v163 = vld [vmem:[#allocation5 + $0x2a0] sm:$0xff]
    %v164 = vld [vmem:[#allocation5 + $0x2a8] sm:$0xff]
    %v165 = vld [vmem:[#allocation5 + $0x2b0] sm:$0xff]
    %v166 = vld [vmem:[#allocation5 + $0x2b8] sm:$0xff]
    %v167 = vld [vmem:[#allocation5 + $0x2c0] sm:$0xff]
    %v168 = vld [vmem:[#allocation5 + $0x2c8] sm:$0xff]
    %v169 = vld [vmem:[#allocation5 + $0x2d0] sm:$0xff]
    %v170 = vld [vmem:[#allocation5 + $0x2d8] sm:$0xff]
    %v171 = vld [vmem:[#allocation5 + $0x2e0] sm:$0xff]
    %v172 = vld [vmem:[#allocation5 + $0x2e8] sm:$0xff]
    %v173 = vld [vmem:[#allocation5 + $0x2f0] sm:$0xff]
    %v174 = vld [vmem:[#allocation5 + $0x2f8] sm:$0xff]
    %v175 = vld [vmem:[#allocation5 + $0x300] sm:$0xff]
    %v176 = vld [vmem:[#allocation5 + $0x308] sm:$0xff]
    %v177 = vld [vmem:[#allocation5 + $0x310] sm:$0xff]
    %v178 = vld [vmem:[#allocation5 + $0x318] sm:$0xff]
    %v179 = vld [vmem:[#allocation5 + $0x320] sm:$0xff]
    %v180 = vld [vmem:[#allocation5 + $0x328] sm:$0xff]
    %v181 = vld [vmem:[#allocation5 + $0x330] sm:$0xff]
    %v182 = vld [vmem:[#allocation5 + $0x338] sm:$0xff]
    %v183 = vld [vmem:[#allocation5 + $0x340] sm:$0xff]
    %v184 = vld [vmem:[#allocation5 + $0x348] sm:$0xff]
    %v185 = vld [vmem:[#allocation5 + $0x350] sm:$0xff]
    %v186 = vld [vmem:[#allocation5 + $0x358] sm:$0xff]
    %v187 = vld [vmem:[#allocation5 + $0x360] sm:$0xff]
    %v188 = vld [vmem:[#allocation5 + $0x368] sm:$0xff]
    %v189 = vld [vmem:[#allocation5 + $0x370] sm:$0xff]
    %v190 = vld [vmem:[#allocation5 + $0x378] sm:$0xff]
    %v191 = vld [vmem:[#allocation5 + $0x380] sm:$0xff]
    %v192 = vld [vmem:[#allocation5 + $0x388] sm:$0xff]
    %v193 = vld [vmem:[#allocation5 + $0x390] sm:$0xff]
    %v194 = vld [vmem:[#allocation5 + $0x398] sm:$0xff]
    %v195 = vld [vmem:[#allocation5 + $0x3a0] sm:$0xff]
    %v196 = vld [vmem:[#allocation5 + $0x3a8] sm:$0xff]
    %v197 = vld [vmem:[#allocation5 + $0x3b0] sm:$0xff]
    %v198 = vld [vmem:[#allocation5 + $0x3b8] sm:$0xff]
    %v199 = vld [vmem:[#allocation5 + $0x3c0] sm:$0xff]
    %v200 = vld [vmem:[#allocation5 + $0x3c8] sm:$0xff]
    %v201 = vld [vmem:[#allocation5 + $0x3d0] sm:$0xff]
    %v202 = vld [vmem:[#allocation5 + $0x3d8] sm:$0xff]
    %v203 = vld [vmem:[#allocation5 + $0x3e0] sm:$0xff]
    %v204 = vld [vmem:[#allocation5 + $0x3e8] sm:$0xff]
    %v205 = vld [vmem:[#allocation5 + $0x3f0] sm:$0xff]
    %v206 = vld [vmem:[#allocation5 + $0x3f8] sm:$0xff]
    %v207 = vld [vmem:[#allocation5 + $0x400] sm:$0xff]
    %v208 = vld [vmem:[#allocation5 + $0x408] sm:$0xff]
    %v209 = vld [vmem:[#allocation5 + $0x410] sm:$0xff]
    %v210 = vld [vmem:[#allocation5 + $0x418] sm:$0xff]
    %v211 = vld [vmem:[#allocation5 + $0x420] sm:$0xff]
    %v212 = vld [vmem:[#allocation5 + $0x428] sm:$0xff]
    %v213 = vld [vmem:[#allocation5 + $0x430] sm:$0xff]
    %v214 = vld [vmem:[#allocation5 + $0x438] sm:$0xff]
    %v215 = vld [vmem:[#allocation5 + $0x440] sm:$0xff]
    %v216 = vld [vmem:[#allocation5 + $0x448] sm:$0xff]
    %v217 = vld [vmem:[#allocation5 + $0x450] sm:$0xff]
    %v218 = vld [vmem:[#allocation5 + $0x458] sm:$0xff]
    %v219 = vld [vmem:[#allocation5 + $0x460] sm:$0xff]
    %v220 = vld [vmem:[#allocation5 + $0x468] sm:$0xff]
    %v221 = vld [vmem:[#allocation5 + $0x470] sm:$0xff]
    %v222 = vld [vmem:[#allocation5 + $0x478] sm:$0xff]
    %v223 = vld [vmem:[#allocation5 + $0x480] sm:$0xff]
    %v224 = vld [vmem:[#allocation5 + $0x488] sm:$0xff]
    %v225 = vld [vmem:[#allocation5 + $0x490] sm:$0xff]
    %v226 = vld [vmem:[#allocation5 + $0x498] sm:$0xff]
    %v227 = vld [vmem:[#allocation5 + $0x4a0] sm:$0xff]
    %v228 = vld [vmem:[#allocation5 + $0x4a8] sm:$0xff]
    %v229 = vld [vmem:[#allocation5 + $0x4b0] sm:$0xff]
    %v230 = vld [vmem:[#allocation5 + $0x4b8] sm:$0xff]
    %v231 = vld [vmem:[#allocation5 + $0x4c0] sm:$0xff]
    %v232 = vld [vmem:[#allocation5 + $0x4c8] sm:$0xff]
    %v233 = vld [vmem:[#allocation5 + $0x4d0] sm:$0xff]
    %v234 = vld [vmem:[#allocation5 + $0x4d8] sm:$0xff]
    %v235 = vld [vmem:[#allocation5 + $0x4e0] sm:$0xff]
    %v236 = vld [vmem:[#allocation5 + $0x4e8] sm:$0xff]
    %v237 = vld [vmem:[#allocation5 + $0x4f0] sm:$0xff]
    %v238 = vld [vmem:[#allocation5 + $0x4f8] sm:$0xff]
    %v239 = vld [vmem:[#allocation5 + $0x500] sm:$0xff]
    %v240 = vld [vmem:[#allocation5 + $0x508] sm:$0xff]
    %v241 = vld [vmem:[#allocation5 + $0x510] sm:$0xff]
    %v242 = vld [vmem:[#allocation5 + $0x518] sm:$0xff]
    %v243 = vld [vmem:[#allocation5 + $0x520] sm:$0xff]
    %v244 = vld [vmem:[#allocation5 + $0x528] sm:$0xff]
    %v245 = vld [vmem:[#allocation5 + $0x530] sm:$0xff]
    %v246 = vld [vmem:[#allocation5 + $0x538] sm:$0xff]
    %v247 = vld [vmem:[#allocation5 + $0x540] sm:$0xff]
    %v248 = vld [vmem:[#allocation5 + $0x548] sm:$0xff]
    %v249 = vld [vmem:[#allocation5 + $0x550] sm:$0xff]
    %v250 = vld [vmem:[#allocation5 + $0x558] sm:$0xff]
    %v251 = vld [vmem:[#allocation5 + $0x560] sm:$0xff]
    %v252 = vld [vmem:[#allocation5 + $0x568] sm:$0xff]
    %v253 = vld [vmem:[#allocation5 + $0x570] sm:$0xff]
    %v254 = vld [vmem:[#allocation5 + $0x578] sm:$0xff]
    %v255 = vld [vmem:[#allocation5 + $0x580] sm:$0xff]
    %v256 = vld [vmem:[#allocation5 + $0x588] sm:$0xff]
    %v257 = vld [vmem:[#allocation5 + $0x590] sm:$0xff]
    %v258 = vld [vmem:[#allocation5 + $0x598] sm:$0xff]
    %v259 = vld [vmem:[#allocation5 + $0x5a0] sm:$0xff]
    %v260 = vld [vmem:[#allocation5 + $0x5a8] sm:$0xff]
    %v261 = vld [vmem:[#allocation5 + $0x5b0] sm:$0xff]
    %v262 = vld [vmem:[#allocation5 + $0x5b8] sm:$0xff]
    %v263 = vld [vmem:[#allocation5 + $0x5c0] sm:$0xff]
    %v264 = vld [vmem:[#allocation5 + $0x5c8] sm:$0xff]
    %v265 = vld [vmem:[#allocation5 + $0x5d0] sm:$0xff]
    %v266 = vld [vmem:[#allocation5 + $0x5d8] sm:$0xff]
    %v267 = vld [vmem:[#allocation5 + $0x5e0] sm:$0xff]
    %v268 = vld [vmem:[#allocation5 + $0x5e8] sm:$0xff]
    %v269 = vld [vmem:[#allocation5 + $0x5f0] sm:$0xff]
    %v270 = vld [vmem:[#allocation5 + $0x5f8] sm:$0xff]
    %v271 = vld [vmem:[#allocation7] sm:$0xff]
    %v273 = vlaneseq
    %v274 = vshrl.u32 %v273, 7
    %v275 = vsub.s32 0, %v274
    %v276 = vrot.slane %v271, %v275
    %v277 = vlaneseq
    %v278 = vshrl.u32 %v277, 7
    %v279 = vsub.s32 1, %v278
    %v280 = vrot.slane %v271, %v279
    %v281 = vlaneseq
    %v282 = vshrl.u32 %v281, 7
    %v283 = vsub.s32 2, %v282
    %v284 = vrot.slane %v271, %v283
    %v285 = vlaneseq
    %v286 = vshrl.u32 %v285, 7
    %v287 = vsub.s32 3, %v286
    %v288 = vrot.slane %v271, %v287
    %v289 = vlaneseq
    %v290 = vshrl.u32 %v289, 7
    %v291 = vsub.s32 4, %v290
    %v292 = vrot.slane %v271, %v291
    %v293 = vlaneseq
    %v294 = vshrl.u32 %v293, 7
    %v295 = vsub.s32 5, %v294
    %v296 = vrot.slane %v271, %v295
    %v297 = vlaneseq
    %v298 = vshrl.u32 %v297, 7
    %v299 = vsub.s32 6, %v298
    %v300 = vrot.slane %v271, %v299
    %v301 = vlaneseq
    %v302 = vshrl.u32 %v301, 7
    %v303 = vsub.s32 7, %v302
    %v304 = vrot.slane %v271, %v303
    %v505 = vunpack.c.l.b16 %v79
    %v506 = vunpack.c.h.b16 %v79
    %v507 = vunpack.c.l.b16 %v80
    %v508 = vunpack.c.h.b16 %v80
    %v509 = vunpack.c.l.b16 %v81
    %v510 = vunpack.c.h.b16 %v81
    %v511 = vunpack.c.l.b16 %v82
    %v512 = vunpack.c.h.b16 %v82
    %v513 = vunpack.c.l.b16 %v83
    %v514 = vunpack.c.h.b16 %v83
    %v515 = vunpack.c.l.b16 %v84
    %v516 = vunpack.c.h.b16 %v84
    %v517 = vunpack.c.l.b16 %v85
    %v518 = vunpack.c.h.b16 %v85
    %v519 = vunpack.c.l.b16 %v86
    %v520 = vunpack.c.h.b16 %v86
    %v521 = vunpack.c.l.b16 %v87
    %v522 = vunpack.c.h.b16 %v87
    %v523 = vunpack.c.l.b16 %v88
    %v524 = vunpack.c.h.b16 %v88
    %v525 = vunpack.c.l.b16 %v89
    %v526 = vunpack.c.h.b16 %v89
    %v527 = vunpack.c.l.b16 %v90
    %v528 = vunpack.c.h.b16 %v90
    %v529 = vunpack.c.l.b16 %v91
    %v530 = vunpack.c.h.b16 %v91
    %v531 = vunpack.c.l.b16 %v92
    %v532 = vunpack.c.h.b16 %v92
    %v533 = vunpack.c.l.b16 %v93
    %v534 = vunpack.c.h.b16 %v93
    %v535 = vunpack.c.l.b16 %v94
    %v536 = vunpack.c.h.b16 %v94
    %v537 = vunpack.c.l.b16 %v95
    %v538 = vunpack.c.h.b16 %v95
    %v539 = vunpack.c.l.b16 %v96
    %v540 = vunpack.c.h.b16 %v96
    %v541 = vunpack.c.l.b16 %v97
    %v542 = vunpack.c.h.b16 %v97
    %v543 = vunpack.c.l.b16 %v98
    %v544 = vunpack.c.h.b16 %v98
    %v545 = vunpack.c.l.b16 %v99
    %v546 = vunpack.c.h.b16 %v99
    %v547 = vunpack.c.l.b16 %v100
    %v548 = vunpack.c.h.b16 %v100
    %v549 = vunpack.c.l.b16 %v101
    %v550 = vunpack.c.h.b16 %v101
    %v551 = vunpack.c.l.b16 %v102
    %v552 = vunpack.c.h.b16 %v102
    %v553 = vunpack.c.l.b16 %v103
    %v554 = vunpack.c.h.b16 %v103
    %v555 = vunpack.c.l.b16 %v104
    %v556 = vunpack.c.h.b16 %v104
    %v557 = vunpack.c.l.b16 %v105
    %v558 = vunpack.c.h.b16 %v105
    %v559 = vunpack.c.l.b16 %v106
    %v560 = vunpack.c.h.b16 %v106
    %v561 = vunpack.c.l.b16 %v107
    %v562 = vunpack.c.h.b16 %v107
    %v563 = vunpack.c.l.b16 %v108
    %v564 = vunpack.c.h.b16 %v108
    %v565 = vunpack.c.l.b16 %v109
    %v566 = vunpack.c.h.b16 %v109
    %v567 = vunpack.c.l.b16 %v110
    %v568 = vunpack.c.h.b16 %v110
    %v569 = vunpack.c.l.b16 %v111
    %v570 = vunpack.c.h.b16 %v111
    %v571 = vunpack.c.l.b16 %v112
    %v572 = vunpack.c.h.b16 %v112
    %v573 = vunpack.c.l.b16 %v113
    %v574 = vunpack.c.h.b16 %v113
    %v575 = vunpack.c.l.b16 %v114
    %v576 = vunpack.c.h.b16 %v114
    %v577 = vunpack.c.l.b16 %v115
    %v578 = vunpack.c.h.b16 %v115
    %v579 = vunpack.c.l.b16 %v116
    %v580 = vunpack.c.h.b16 %v116
    %v581 = vunpack.c.l.b16 %v117
    %v582 = vunpack.c.h.b16 %v117
    %v583 = vunpack.c.l.b16 %v118
    %v584 = vunpack.c.h.b16 %v118
    %v585 = vunpack.c.l.b16 %v119
    %v586 = vunpack.c.h.b16 %v119
    %v587 = vunpack.c.l.b16 %v120
    %v588 = vunpack.c.h.b16 %v120
    %v589 = vunpack.c.l.b16 %v121
    %v590 = vunpack.c.h.b16 %v121
    %v591 = vunpack.c.l.b16 %v122
    %v592 = vunpack.c.h.b16 %v122
    %v593 = vunpack.c.l.b16 %v123
    %v594 = vunpack.c.h.b16 %v123
    %v595 = vunpack.c.l.b16 %v124
    %v596 = vunpack.c.h.b16 %v124
    %v597 = vunpack.c.l.b16 %v125
    %v598 = vunpack.c.h.b16 %v125
    %v599 = vunpack.c.l.b16 %v126
    %v600 = vunpack.c.h.b16 %v126
    %v601 = vunpack.c.l.b16 %v127
    %v602 = vunpack.c.h.b16 %v127
    %v603 = vunpack.c.l.b16 %v128
    %v604 = vunpack.c.h.b16 %v128
    %v605 = vunpack.c.l.b16 %v129
    %v606 = vunpack.c.h.b16 %v129
    %v607 = vunpack.c.l.b16 %v130
    %v608 = vunpack.c.h.b16 %v130
    %v609 = vunpack.c.l.b16 %v131
    %v610 = vunpack.c.h.b16 %v131
    %v611 = vunpack.c.l.b16 %v132
    %v612 = vunpack.c.h.b16 %v132
    %v613 = vunpack.c.l.b16 %v133
    %v614 = vunpack.c.h.b16 %v133
    %v615 = vunpack.c.l.b16 %v134
    %v616 = vunpack.c.h.b16 %v134
    %v617 = vunpack.c.l.b16 %v135
    %v618 = vunpack.c.h.b16 %v135
    %v619 = vunpack.c.l.b16 %v136
    %v620 = vunpack.c.h.b16 %v136
    %v621 = vunpack.c.l.b16 %v137
    %v622 = vunpack.c.h.b16 %v137
    %v623 = vunpack.c.l.b16 %v138
    %v624 = vunpack.c.h.b16 %v138
    %v625 = vunpack.c.l.b16 %v139
    %v626 = vunpack.c.h.b16 %v139
    %v627 = vunpack.c.l.b16 %v140
    %v628 = vunpack.c.h.b16 %v140
    %v629 = vunpack.c.l.b16 %v141
    %v630 = vunpack.c.h.b16 %v141
    %v631 = vunpack.c.l.b16 %v142
    %v632 = vunpack.c.h.b16 %v142
    %v633 = vunpack.c.l.b16 %v143
    %v634 = vunpack.c.h.b16 %v143
    %v635 = vunpack.c.l.b16 %v144
    %v636 = vunpack.c.h.b16 %v144
    %v637 = vunpack.c.l.b16 %v145
    %v638 = vunpack.c.h.b16 %v145
    %v639 = vunpack.c.l.b16 %v146
    %v640 = vunpack.c.h.b16 %v146
    %v641 = vunpack.c.l.b16 %v147
    %v642 = vunpack.c.h.b16 %v147
    %v643 = vunpack.c.l.b16 %v148
    %v644 = vunpack.c.h.b16 %v148
    %v645 = vunpack.c.l.b16 %v149
    %v646 = vunpack.c.h.b16 %v149
    %v647 = vunpack.c.l.b16 %v150
    %v648 = vunpack.c.h.b16 %v150
    %v649 = vunpack.c.l.b16 %v151
    %v650 = vunpack.c.h.b16 %v151
    %v651 = vunpack.c.l.b16 %v152
    %v652 = vunpack.c.h.b16 %v152
    %v653 = vunpack.c.l.b16 %v153
    %v654 = vunpack.c.h.b16 %v153
    %v655 = vunpack.c.l.b16 %v154
    %v656 = vunpack.c.h.b16 %v154
    %v657 = vunpack.c.l.b16 %v155
    %v658 = vunpack.c.h.b16 %v155
    %v659 = vunpack.c.l.b16 %v156
    %v660 = vunpack.c.h.b16 %v156
    %v661 = vunpack.c.l.b16 %v157
    %v662 = vunpack.c.h.b16 %v157
    %v663 = vunpack.c.l.b16 %v158
    %v664 = vunpack.c.h.b16 %v158
    %v665 = vunpack.c.l.b16 %v159
    %v666 = vunpack.c.h.b16 %v159
    %v667 = vunpack.c.l.b16 %v160
    %v668 = vunpack.c.h.b16 %v160
    %v669 = vunpack.c.l.b16 %v161
    %v670 = vunpack.c.h.b16 %v161
    %v671 = vunpack.c.l.b16 %v162
    %v672 = vunpack.c.h.b16 %v162
    %v673 = vunpack.c.l.b16 %v163
    %v674 = vunpack.c.h.b16 %v163
    %v675 = vunpack.c.l.b16 %v164
    %v676 = vunpack.c.h.b16 %v164
    %v677 = vunpack.c.l.b16 %v165
    %v678 = vunpack.c.h.b16 %v165
    %v679 = vunpack.c.l.b16 %v166
    %v680 = vunpack.c.h.b16 %v166
    %v681 = vunpack.c.l.b16 %v167
    %v682 = vunpack.c.h.b16 %v167
    %v683 = vunpack.c.l.b16 %v168
    %v684 = vunpack.c.h.b16 %v168
    %v685 = vunpack.c.l.b16 %v169
    %v686 = vunpack.c.h.b16 %v169
    %v687 = vunpack.c.l.b16 %v170
    %v688 = vunpack.c.h.b16 %v170
    %v689 = vunpack.c.l.b16 %v171
    %v690 = vunpack.c.h.b16 %v171
    %v691 = vunpack.c.l.b16 %v172
    %v692 = vunpack.c.h.b16 %v172
    %v693 = vunpack.c.l.b16 %v173
    %v694 = vunpack.c.h.b16 %v173
    %v695 = vunpack.c.l.b16 %v174
    %v696 = vunpack.c.h.b16 %v174
    %v697 = vunpack.c.l.b16 %v175
    %v698 = vunpack.c.h.b16 %v175
    %v699 = vunpack.c.l.b16 %v176
    %v700 = vunpack.c.h.b16 %v176
    %v701 = vunpack.c.l.b16 %v177
    %v702 = vunpack.c.h.b16 %v177
    %v703 = vunpack.c.l.b16 %v178
    %v704 = vunpack.c.h.b16 %v178
    %v705 = vunpack.c.l.b16 %v179
    %v706 = vunpack.c.h.b16 %v179
    %v707 = vunpack.c.l.b16 %v180
    %v708 = vunpack.c.h.b16 %v180
    %v709 = vunpack.c.l.b16 %v181
    %v710 = vunpack.c.h.b16 %v181
    %v711 = vunpack.c.l.b16 %v182
    %v712 = vunpack.c.h.b16 %v182
    %v713 = vunpack.c.l.b16 %v183
    %v714 = vunpack.c.h.b16 %v183
    %v715 = vunpack.c.l.b16 %v184
    %v716 = vunpack.c.h.b16 %v184
    %v717 = vunpack.c.l.b16 %v185
    %v718 = vunpack.c.h.b16 %v185
    %v719 = vunpack.c.l.b16 %v186
    %v720 = vunpack.c.h.b16 %v186
    %v721 = vunpack.c.l.b16 %v187
    %v722 = vunpack.c.h.b16 %v187
    %v723 = vunpack.c.l.b16 %v188
    %v724 = vunpack.c.h.b16 %v188
    %v725 = vunpack.c.l.b16 %v189
    %v726 = vunpack.c.h.b16 %v189
    %v727 = vunpack.c.l.b16 %v190
    %v728 = vunpack.c.h.b16 %v190
    %v729 = vunpack.c.l.b16 %v191
    %v730 = vunpack.c.h.b16 %v191
    %v731 = vunpack.c.l.b16 %v192
    %v732 = vunpack.c.h.b16 %v192
    %v733 = vunpack.c.l.b16 %v193
    %v734 = vunpack.c.h.b16 %v193
    %v735 = vunpack.c.l.b16 %v194
    %v736 = vunpack.c.h.b16 %v194
    %v737 = vunpack.c.l.b16 %v195
    %v738 = vunpack.c.h.b16 %v195
    %v739 = vunpack.c.l.b16 %v196
    %v740 = vunpack.c.h.b16 %v196
    %v741 = vunpack.c.l.b16 %v197
    %v742 = vunpack.c.h.b16 %v197
    %v743 = vunpack.c.l.b16 %v198
    %v744 = vunpack.c.h.b16 %v198
    %v745 = vunpack.c.l.b16 %v199
    %v746 = vunpack.c.h.b16 %v199
    %v747 = vunpack.c.l.b16 %v200
    %v748 = vunpack.c.h.b16 %v200
    %v749 = vunpack.c.l.b16 %v201
    %v750 = vunpack.c.h.b16 %v201
    %v751 = vunpack.c.l.b16 %v202
    %v752 = vunpack.c.h.b16 %v202
    %v753 = vunpack.c.l.b16 %v203
    %v754 = vunpack.c.h.b16 %v203
    %v755 = vunpack.c.l.b16 %v204
    %v756 = vunpack.c.h.b16 %v204
    %v757 = vunpack.c.l.b16 %v205
    %v758 = vunpack.c.h.b16 %v205
    %v759 = vunpack.c.l.b16 %v206
    %v760 = vunpack.c.h.b16 %v206
    %v761 = vunpack.c.l.b16 %v207
    %v762 = vunpack.c.h.b16 %v207
    %v763 = vunpack.c.l.b16 %v208
    %v764 = vunpack.c.h.b16 %v208
    %v765 = vunpack.c.l.b16 %v209
    %v766 = vunpack.c.h.b16 %v209
    %v767 = vunpack.c.l.b16 %v210
    %v768 = vunpack.c.h.b16 %v210
    %v769 = vunpack.c.l.b16 %v211
    %v770 = vunpack.c.h.b16 %v211
    %v771 = vunpack.c.l.b16 %v212
    %v772 = vunpack.c.h.b16 %v212
    %v773 = vunpack.c.l.b16 %v213
    %v774 = vunpack.c.h.b16 %v213
    %v775 = vunpack.c.l.b16 %v214
    %v776 = vunpack.c.h.b16 %v214
    %v777 = vunpack.c.l.b16 %v215
    %v778 = vunpack.c.h.b16 %v215
    %v779 = vunpack.c.l.b16 %v216
    %v780 = vunpack.c.h.b16 %v216
    %v781 = vunpack.c.l.b16 %v217
    %v782 = vunpack.c.h.b16 %v217
    %v783 = vunpack.c.l.b16 %v218
    %v784 = vunpack.c.h.b16 %v218
    %v785 = vunpack.c.l.b16 %v219
    %v786 = vunpack.c.h.b16 %v219
    %v787 = vunpack.c.l.b16 %v220
    %v788 = vunpack.c.h.b16 %v220
    %v789 = vunpack.c.l.b16 %v221
    %v790 = vunpack.c.h.b16 %v221
    %v791 = vunpack.c.l.b16 %v222
    %v792 = vunpack.c.h.b16 %v222
    %v793 = vunpack.c.l.b16 %v223
    %v794 = vunpack.c.h.b16 %v223
    %v795 = vunpack.c.l.b16 %v224
    %v796 = vunpack.c.h.b16 %v224
    %v797 = vunpack.c.l.b16 %v225
    %v798 = vunpack.c.h.b16 %v225
    %v799 = vunpack.c.l.b16 %v226
    %v800 = vunpack.c.h.b16 %v226
    %v801 = vunpack.c.l.b16 %v227
    %v802 = vunpack.c.h.b16 %v227
    %v803 = vunpack.c.l.b16 %v228
    %v804 = vunpack.c.h.b16 %v228
    %v805 = vunpack.c.l.b16 %v229
    %v806 = vunpack.c.h.b16 %v229
    %v807 = vunpack.c.l.b16 %v230
    %v808 = vunpack.c.h.b16 %v230
    %v809 = vunpack.c.l.b16 %v231
    %v810 = vunpack.c.h.b16 %v231
    %v811 = vunpack.c.l.b16 %v232
    %v812 = vunpack.c.h.b16 %v232
    %v813 = vunpack.c.l.b16 %v233
    %v814 = vunpack.c.h.b16 %v233
    %v815 = vunpack.c.l.b16 %v234
    %v816 = vunpack.c.h.b16 %v234
    %v817 = vunpack.c.l.b16 %v235
    %v818 = vunpack.c.h.b16 %v235
    %v819 = vunpack.c.l.b16 %v236
    %v820 = vunpack.c.h.b16 %v236
    %v821 = vunpack.c.l.b16 %v237
    %v822 = vunpack.c.h.b16 %v237
    %v823 = vunpack.c.l.b16 %v238
    %v824 = vunpack.c.h.b16 %v238
    %v825 = vunpack.c.l.b16 %v239
    %v826 = vunpack.c.h.b16 %v239
    %v827 = vunpack.c.l.b16 %v240
    %v828 = vunpack.c.h.b16 %v240
    %v829 = vunpack.c.l.b16 %v241
    %v830 = vunpack.c.h.b16 %v241
    %v831 = vunpack.c.l.b16 %v242
    %v832 = vunpack.c.h.b16 %v242
    %v833 = vunpack.c.l.b16 %v243
    %v834 = vunpack.c.h.b16 %v243
    %v835 = vunpack.c.l.b16 %v244
    %v836 = vunpack.c.h.b16 %v244
    %v837 = vunpack.c.l.b16 %v245
    %v838 = vunpack.c.h.b16 %v245
    %v839 = vunpack.c.l.b16 %v246
    %v840 = vunpack.c.h.b16 %v246
    %v841 = vunpack.c.l.b16 %v247
    %v842 = vunpack.c.h.b16 %v247
    %v843 = vunpack.c.l.b16 %v248
    %v844 = vunpack.c.h.b16 %v248
    %v845 = vunpack.c.l.b16 %v249
    %v846 = vunpack.c.h.b16 %v249
    %v847 = vunpack.c.l.b16 %v250
    %v848 = vunpack.c.h.b16 %v250
    %v849 = vunpack.c.l.b16 %v251
    %v850 = vunpack.c.h.b16 %v251
    %v851 = vunpack.c.l.b16 %v252
    %v852 = vunpack.c.h.b16 %v252
    %v853 = vunpack.c.l.b16 %v253
    %v854 = vunpack.c.h.b16 %v253
    %v855 = vunpack.c.l.b16 %v254
    %v856 = vunpack.c.h.b16 %v254
    %v857 = vunpack.c.l.b16 %v255
    %v858 = vunpack.c.h.b16 %v255
    %v859 = vunpack.c.l.b16 %v256
    %v860 = vunpack.c.h.b16 %v256
    %v861 = vunpack.c.l.b16 %v257
    %v862 = vunpack.c.h.b16 %v257
    %v863 = vunpack.c.l.b16 %v258
    %v864 = vunpack.c.h.b16 %v258
    %v865 = vunpack.c.l.b16 %v259
    %v866 = vunpack.c.h.b16 %v259
    %v867 = vunpack.c.l.b16 %v260
    %v868 = vunpack.c.h.b16 %v260
    %v869 = vunpack.c.l.b16 %v261
    %v870 = vunpack.c.h.b16 %v261
    %v871 = vunpack.c.l.b16 %v262
    %v872 = vunpack.c.h.b16 %v262
    %v873 = vunpack.c.l.b16 %v263
    %v874 = vunpack.c.h.b16 %v263
    %v875 = vunpack.c.l.b16 %v264
    %v876 = vunpack.c.h.b16 %v264
    %v877 = vunpack.c.l.b16 %v265
    %v878 = vunpack.c.h.b16 %v265
    %v879 = vunpack.c.l.b16 %v266
    %v880 = vunpack.c.h.b16 %v266
    %v881 = vunpack.c.l.b16 %v267
    %v882 = vunpack.c.h.b16 %v267
    %v883 = vunpack.c.l.b16 %v268
    %v884 = vunpack.c.h.b16 %v268
    %v885 = vunpack.c.l.b16 %v269
    %v886 = vunpack.c.h.b16 %v269
    %v887 = vunpack.c.l.b16 %v270
    %v888 = vunpack.c.h.b16 %v270
    %v889 = vpack.c.b16 %v513, %v505
    %v890 = vpack.c.b16 %v514, %v506
    %v891 = vpack.c.b16 %v515, %v507
    %v892 = vpack.c.b16 %v516, %v508
    %v893 = vpack.c.b16 %v517, %v509
    %v894 = vpack.c.b16 %v518, %v510
    %v895 = vpack.c.b16 %v519, %v511
    %v896 = vpack.c.b16 %v520, %v512
    %v897 = vpack.c.b16 %v529, %v521
    %v898 = vpack.c.b16 %v530, %v522
    %v899 = vpack.c.b16 %v531, %v523
    %v900 = vpack.c.b16 %v532, %v524
    %v901 = vpack.c.b16 %v533, %v525
    %v902 = vpack.c.b16 %v534, %v526
    %v903 = vpack.c.b16 %v535, %v527
    %v904 = vpack.c.b16 %v536, %v528
    %v905 = vpack.c.b16 %v545, %v537
    %v906 = vpack.c.b16 %v546, %v538
    %v907 = vpack.c.b16 %v547, %v539
    %v908 = vpack.c.b16 %v548, %v540
    %v909 = vpack.c.b16 %v549, %v541
    %v910 = vpack.c.b16 %v550, %v542
    %v911 = vpack.c.b16 %v551, %v543
    %v912 = vpack.c.b16 %v552, %v544
    %v913 = vpack.c.b16 %v561, %v553
    %v914 = vpack.c.b16 %v562, %v554
    %v915 = vpack.c.b16 %v563, %v555
    %v916 = vpack.c.b16 %v564, %v556
    %v917 = vpack.c.b16 %v565, %v557
    %v918 = vpack.c.b16 %v566, %v558
    %v919 = vpack.c.b16 %v567, %v559
    %v920 = vpack.c.b16 %v568, %v560
    %v921 = vpack.c.b16 %v577, %v569
    %v922 = vpack.c.b16 %v578, %v570
    %v923 = vpack.c.b16 %v579, %v571
    %v924 = vpack.c.b16 %v580, %v572
    %v925 = vpack.c.b16 %v581, %v573
    %v926 = vpack.c.b16 %v582, %v574
    %v927 = vpack.c.b16 %v583, %v575
    %v928 = vpack.c.b16 %v584, %v576
    %v929 = vpack.c.b16 %v593, %v585
    %v930 = vpack.c.b16 %v594, %v586
    %v931 = vpack.c.b16 %v595, %v587
    %v932 = vpack.c.b16 %v596, %v588
    %v933 = vpack.c.b16 %v597, %v589
    %v934 = vpack.c.b16 %v598, %v590
    %v935 = vpack.c.b16 %v599, %v591
    %v936 = vpack.c.b16 %v600, %v592
    %v937 = vpack.c.b16 %v609, %v601
    %v938 = vpack.c.b16 %v610, %v602
    %v939 = vpack.c.b16 %v611, %v603
    %v940 = vpack.c.b16 %v612, %v604
    %v941 = vpack.c.b16 %v613, %v605
    %v942 = vpack.c.b16 %v614, %v606
    %v943 = vpack.c.b16 %v615, %v607
    %v944 = vpack.c.b16 %v616, %v608
    %v945 = vpack.c.b16 %v625, %v617
    %v946 = vpack.c.b16 %v626, %v618
    %v947 = vpack.c.b16 %v627, %v619
    %v948 = vpack.c.b16 %v628, %v620
    %v949 = vpack.c.b16 %v629, %v621
    %v950 = vpack.c.b16 %v630, %v622
    %v951 = vpack.c.b16 %v631, %v623
    %v952 = vpack.c.b16 %v632, %v624
    %v953 = vpack.c.b16 %v641, %v633
    %v954 = vpack.c.b16 %v642, %v634
    %v955 = vpack.c.b16 %v643, %v635
    %v956 = vpack.c.b16 %v644, %v636
    %v957 = vpack.c.b16 %v645, %v637
    %v958 = vpack.c.b16 %v646, %v638
    %v959 = vpack.c.b16 %v647, %v639
    %v960 = vpack.c.b16 %v648, %v640
    %v961 = vpack.c.b16 %v657, %v649
    %v962 = vpack.c.b16 %v658, %v650
    %v963 = vpack.c.b16 %v659, %v651
    %v964 = vpack.c.b16 %v660, %v652
    %v965 = vpack.c.b16 %v661, %v653
    %v966 = vpack.c.b16 %v662, %v654
    %v967 = vpack.c.b16 %v663, %v655
    %v968 = vpack.c.b16 %v664, %v656
    %v969 = vpack.c.b16 %v673, %v665
    %v970 = vpack.c.b16 %v674, %v666
    %v971 = vpack.c.b16 %v675, %v667
    %v972 = vpack.c.b16 %v676, %v668
    %v973 = vpack.c.b16 %v677, %v669
    %v974 = vpack.c.b16 %v678, %v670
    %v975 = vpack.c.b16 %v679, %v671
    %v976 = vpack.c.b16 %v680, %v672
    %v977 = vpack.c.b16 %v689, %v681
    %v978 = vpack.c.b16 %v690, %v682
    %v979 = vpack.c.b16 %v691, %v683
    %v980 = vpack.c.b16 %v692, %v684
    %v981 = vpack.c.b16 %v693, %v685
    %v982 = vpack.c.b16 %v694, %v686
    %v983 = vpack.c.b16 %v695, %v687
    %v984 = vpack.c.b16 %v696, %v688
    %v985 = vpack.c.b16 %v705, %v697
    %v986 = vpack.c.b16 %v706, %v698
    %v987 = vpack.c.b16 %v707, %v699
    %v988 = vpack.c.b16 %v708, %v700
    %v989 = vpack.c.b16 %v709, %v701
    %v990 = vpack.c.b16 %v710, %v702
    %v991 = vpack.c.b16 %v711, %v703
    %v992 = vpack.c.b16 %v712, %v704
    %v993 = vpack.c.b16 %v721, %v713
    %v994 = vpack.c.b16 %v722, %v714
    %v995 = vpack.c.b16 %v723, %v715
    %v996 = vpack.c.b16 %v724, %v716
    %v997 = vpack.c.b16 %v725, %v717
    %v998 = vpack.c.b16 %v726, %v718
    %v999 = vpack.c.b16 %v727, %v719
    %v1000 = vpack.c.b16 %v728, %v720
    %v1001 = vpack.c.b16 %v737, %v729
    %v1002 = vpack.c.b16 %v738, %v730
    %v1003 = vpack.c.b16 %v739, %v731
    %v1004 = vpack.c.b16 %v740, %v732
    %v1005 = vpack.c.b16 %v741, %v733
    %v1006 = vpack.c.b16 %v742, %v734
    %v1007 = vpack.c.b16 %v743, %v735
    %v1008 = vpack.c.b16 %v744, %v736
    %v1009 = vpack.c.b16 %v753, %v745
    %v1010 = vpack.c.b16 %v754, %v746
    %v1011 = vpack.c.b16 %v755, %v747
    %v1012 = vpack.c.b16 %v756, %v748
    %v1013 = vpack.c.b16 %v757, %v749
    %v1014 = vpack.c.b16 %v758, %v750
    %v1015 = vpack.c.b16 %v759, %v751
    %v1016 = vpack.c.b16 %v760, %v752
    %v1017 = vpack.c.b16 %v769, %v761
    %v1018 = vpack.c.b16 %v770, %v762
    %v1019 = vpack.c.b16 %v771, %v763
    %v1020 = vpack.c.b16 %v772, %v764
    %v1021 = vpack.c.b16 %v773, %v765
    %v1022 = vpack.c.b16 %v774, %v766
    %v1023 = vpack.c.b16 %v775, %v767
    %v1024 = vpack.c.b16 %v776, %v768
    %v1025 = vpack.c.b16 %v785, %v777
    %v1026 = vpack.c.b16 %v786, %v778
    %v1027 = vpack.c.b16 %v787, %v779
    %v1028 = vpack.c.b16 %v788, %v780
    %v1029 = vpack.c.b16 %v789, %v781
    %v1030 = vpack.c.b16 %v790, %v782
    %v1031 = vpack.c.b16 %v791, %v783
    %v1032 = vpack.c.b16 %v792, %v784
    %v1033 = vpack.c.b16 %v801, %v793
    %v1034 = vpack.c.b16 %v802, %v794
    %v1035 = vpack.c.b16 %v803, %v795
    %v1036 = vpack.c.b16 %v804, %v796
    %v1037 = vpack.c.b16 %v805, %v797
    %v1038 = vpack.c.b16 %v806, %v798
    %v1039 = vpack.c.b16 %v807, %v799
    %v1040 = vpack.c.b16 %v808, %v800
    %v1041 = vpack.c.b16 %v817, %v809
    %v1042 = vpack.c.b16 %v818, %v810
    %v1043 = vpack.c.b16 %v819, %v811
    %v1044 = vpack.c.b16 %v820, %v812
    %v1045 = vpack.c.b16 %v821, %v813
    %v1046 = vpack.c.b16 %v822, %v814
    %v1047 = vpack.c.b16 %v823, %v815
    %v1048 = vpack.c.b16 %v824, %v816
    %v1049 = vpack.c.b16 %v833, %v825
    %v1050 = vpack.c.b16 %v834, %v826
    %v1051 = vpack.c.b16 %v835, %v827
    %v1052 = vpack.c.b16 %v836, %v828
    %v1053 = vpack.c.b16 %v837, %v829
    %v1054 = vpack.c.b16 %v838, %v830
    %v1055 = vpack.c.b16 %v839, %v831
    %v1056 = vpack.c.b16 %v840, %v832
    %v1057 = vpack.c.b16 %v849, %v841
    %v1058 = vpack.c.b16 %v850, %v842
    %v1059 = vpack.c.b16 %v851, %v843
    %v1060 = vpack.c.b16 %v852, %v844
    %v1061 = vpack.c.b16 %v853, %v845
    %v1062 = vpack.c.b16 %v854, %v846
    %v1063 = vpack.c.b16 %v855, %v847
    %v1064 = vpack.c.b16 %v856, %v848
    %v1065 = vpack.c.b16 %v865, %v857
    %v1066 = vpack.c.b16 %v866, %v858
    %v1067 = vpack.c.b16 %v867, %v859
    %v1068 = vpack.c.b16 %v868, %v860
    %v1069 = vpack.c.b16 %v869, %v861
    %v1070 = vpack.c.b16 %v870, %v862
    %v1071 = vpack.c.b16 %v871, %v863
    %v1072 = vpack.c.b16 %v872, %v864
    %v1073 = vpack.c.b16 %v881, %v873
    %v1074 = vpack.c.b16 %v882, %v874
    %v1075 = vpack.c.b16 %v883, %v875
    %v1076 = vpack.c.b16 %v884, %v876
    %v1077 = vpack.c.b16 %v885, %v877
    %v1078 = vpack.c.b16 %v886, %v878
    %v1079 = vpack.c.b16 %v887, %v879
    %v1080 = vpack.c.b16 %v888, %v880
    %1273 = vmatprep.subr.bf16.mxu0 %v890
    %1274 = vmatpush1.bf16.msra.mxu0 %v889
    %1275 = vmatprep.subr.bf16.mxu0 %v898
    %1276 = vmatpush1.bf16.msra.mxu0 %v897
    %1277 = vmatprep.subr.bf16.mxu0 %v906
    %1278 = vmatpush1.bf16.msra.mxu0 %v905
    %1279 = vmatprep.subr.bf16.mxu0 %v914
    %1280 = vmatpush1.bf16.msra.mxu0 %v913
    %1281 = vmatprep.subr.bf16.mxu0 %v922
    %1282 = vmatpush1.bf16.msra.mxu0 %v921
    %1283 = vmatprep.subr.bf16.mxu0 %v930
    %1284 = vmatpush1.bf16.msra.mxu0 %v929
    %1285 = vmatprep.subr.bf16.mxu0 %v938
    %1286 = vmatpush1.bf16.msra.mxu0 %v937
    %1287 = vmatprep.subr.bf16.mxu0 %v946
    %1288 = vmatpush1.bf16.msra.mxu0 %v945
    %1289 = vmatprep.subr.bf16.mxu0 %v954
    %1290 = vmatpush1.bf16.msra.mxu0 %v953
    %1291 = vmatprep.subr.bf16.mxu0 %v962
    %1292 = vmatpush1.bf16.msra.mxu0 %v961
    %1293 = vmatprep.subr.bf16.mxu0 %v970
    %1294 = vmatpush1.bf16.msra.mxu0 %v969
    %1295 = vmatprep.subr.bf16.mxu0 %v978
    %1296 = vmatpush1.bf16.msra.mxu0 %v977
    %1297 = vmatprep.subr.bf16.mxu0 %v986
    %1298 = vmatpush1.bf16.msra.mxu0 %v985
    %1299 = vmatprep.subr.bf16.mxu0 %v994
    %1300 = vmatpush1.bf16.msra.mxu0 %v993
    %1301 = vmatprep.subr.bf16.mxu0 %v1002
    %1302 = vmatpush1.bf16.msra.mxu0 %v1001
    %1303 = vmatprep.subr.bf16.mxu0 %v1010
    %1304 = vmatpush1.bf16.msra.mxu0 %v1009
    %1305 = vmatprep.mubr.bf16.mxu0 %v77
    %1306 = vmatmul.mubr.bf16.gmra.mrb[0].mxu0 %v76
    %v1307 = vpop.f32.mrb[0].mxu0
    %v1308 = vadd.f32 %v276, %v1307
    %v1309 = vpop.f32.mrb[0].mxu0
    %v1310 = vadd.f32 %v280, %v1309
    %v1311 = vpop.f32.mrb[0].mxu0
    %v1312 = vpop.f32.mrb[0].mxu0
    %1313 = vdwg.mxu0
    %1314 = vmatprep.subr.bf16.mxu0 %v1018
    %1315 = vmatpush1.bf16.msra.mxu0 %v1017
    %1316 = vmatprep.subr.bf16.mxu0 %v1026
    %1317 = vmatpush1.bf16.msra.mxu0 %v1025
    %1318 = vmatprep.subr.bf16.mxu0 %v1034
    %1319 = vmatpush1.bf16.msra.mxu0 %v1033
    %1320 = vmatprep.subr.bf16.mxu0 %v1042
    %1321 = vmatpush1.bf16.msra.mxu0 %v1041
    %1322 = vmatprep.subr.bf16.mxu0 %v1050
    %1323 = vmatpush1.bf16.msra.mxu0 %v1049
    %1324 = vmatprep.subr.bf16.mxu0 %v1058
    %1325 = vmatpush1.bf16.msra.mxu0 %v1057
    %1326 = vmatprep.subr.bf16.mxu0 %v1066
    %1327 = vmatpush1.bf16.msra.mxu0 %v1065
    %1328 = vmatprep.subr.bf16.mxu0 %v1074
    %1329 = vmatpush1.bf16.msra.mxu0 %v1073
    %1330 = vmatprep.subr.bf16.mxu0 0
    %1331 = vmatpush1.bf16.msra.mxu0 0
    %1332 = vmatprep.subr.bf16.mxu0 0
    %1333 = vmatpush1.bf16.msra.mxu0 0
    %1334 = vmatprep.subr.bf16.mxu0 0
    %1335 = vmatpush1.bf16.msra.mxu0 0
    %1336 = vmatprep.subr.bf16.mxu0 0
    %1337 = vmatpush1.bf16.msra.mxu0 0
    %1338 = vmatprep.subr.bf16.mxu0 0
    %1339 = vmatpush1.bf16.msra.mxu0 0
    %1340 = vmatprep.subr.bf16.mxu0 0
    %1341 = vmatpush1.bf16.msra.mxu0 0
    %1342 = vmatprep.subr.bf16.mxu0 0
    %1343 = vmatpush1.bf16.msra.mxu0 0
    %1344 = vmatprep.subr.bf16.mxu0 0
    %1345 = vmatpush1.bf16.msra.mxu0 0
    %1346 = vmatprep.mubr.bf16.mxu0 0
    %1347 = vmatmul.mubr.bf16.gmra.mrb[0].mxu0 %v78
    %v1348 = vpop.f32.mrb[0].mxu0
    %v1349 = vadd.f32 %v1308, %v1348
    %v1350 = vpop.f32.mrb[0].mxu0
    %v1351 = vadd.f32 %v1310, %v1350
    %v1352 = vpop.f32.mrb[0].mxu0
    %v1353 = vpop.f32.mrb[0].mxu0
    %1354 = vdwg.mxu0
    %1355 = vmatprep.subr.bf16.mxu0 %v892
    %1356 = vmatpush1.bf16.msra.mxu0 %v891
    %1357 = vmatprep.subr.bf16.mxu0 %v900
    %1358 = vmatpush1.bf16.msra.mxu0 %v899
    %1359 = vmatprep.subr.bf16.mxu0 %v908
    %1360 = vmatpush1.bf16.msra.mxu0 %v907
    %1361 = vmatprep.subr.bf16.mxu0 %v916
    %1362 = vmatpush1.bf16.msra.mxu0 %v915
    %1363 = vmatprep.subr.bf16.mxu0 %v924
    %1364 = vmatpush1.bf16.msra.mxu0 %v923
    %1365 = vmatprep.subr.bf16.mxu0 %v932
    %1366 = vmatpush1.bf16.msra.mxu0 %v931
    %1367 = vmatprep.subr.bf16.mxu0 %v940
    %1368 = vmatpush1.bf16.msra.mxu0 %v939
    %1369 = vmatprep.subr.bf16.mxu0 %v948
    %1370 = vmatpush1.bf16.msra.mxu0 %v947
    %1371 = vmatprep.subr.bf16.mxu0 %v956
    %1372 = vmatpush1.bf16.msra.mxu0 %v955
    %1373 = vmatprep.subr.bf16.mxu0 %v964
    %1374 = vmatpush1.bf16.msra.mxu0 %v963
    %1375 = vmatprep.subr.bf16.mxu0 %v972
    %1376 = vmatpush1.bf16.msra.mxu0 %v971
    %1377 = vmatprep.subr.bf16.mxu0 %v980
    %1378 = vmatpush1.bf16.msra.mxu0 %v979
    %1379 = vmatprep.subr.bf16.mxu0 %v988
    %1380 = vmatpush1.bf16.msra.mxu0 %v987
    %1381 = vmatprep.subr.bf16.mxu0 %v996
    %1382 = vmatpush1.bf16.msra.mxu0 %v995
    %1383 = vmatprep.subr.bf16.mxu0 %v1004
    %1384 = vmatpush1.bf16.msra.mxu0 %v1003
    %1385 = vmatprep.subr.bf16.mxu0 %v1012
    %1386 = vmatpush1.bf16.msra.mxu0 %v1011
    %1387 = vmatprep.mubr.bf16.mxu0 %v77
    %1388 = vmatmul.mubr.bf16.gmra.mrb[0].mxu0 %v76
    %v1389 = vpop.f32.mrb[0].mxu0
    %v1390 = vadd.f32 %v284, %v1389
    %v1391 = vpop.f32.mrb[0].mxu0
    %v1392 = vadd.f32 %v288, %v1391
    %v1393 = vpop.f32.mrb[0].mxu0
    %v1394 = vpop.f32.mrb[0].mxu0
    %1395 = vdwg.mxu0
    %1396 = vmatprep.subr.bf16.mxu0 %v1020
    %1397 = vmatpush1.bf16.msra.mxu0 %v1019
    %1398 = vmatprep.subr.bf16.mxu0 %v1028
    %1399 = vmatpush1.bf16.msra.mxu0 %v1027
    %1400 = vmatprep.subr.bf16.mxu0 %v1036
    %1401 = vmatpush1.bf16.msra.mxu0 %v1035
    %1402 = vmatprep.subr.bf16.mxu0 %v1044
    %1403 = vmatpush1.bf16.msra.mxu0 %v1043
    %1404 = vmatprep.subr.bf16.mxu0 %v1052
    %1405 = vmatpush1.bf16.msra.mxu0 %v1051
    %1406 = vmatprep.subr.bf16.mxu0 %v1060
    %1407 = vmatpush1.bf16.msra.mxu0 %v1059
    %1408 = vmatprep.subr.bf16.mxu0 %v1068
    %1409 = vmatpush1.bf16.msra.mxu0 %v1067
    %1410 = vmatprep.subr.bf16.mxu0 %v1076
    %1411 = vmatpush1.bf16.msra.mxu0 %v1075
    %1412 = vmatprep.subr.bf16.mxu0 0
    %1413 = vmatpush1.bf16.msra.mxu0 0
    %1414 = vmatprep.subr.bf16.mxu0 0
    %1415 = vmatpush1.bf16.msra.mxu0 0
    %1416 = vmatprep.subr.bf16.mxu0 0
    %1417 = vmatpush1.bf16.msra.mxu0 0
    %1418 = vmatprep.subr.bf16.mxu0 0
    %1419 = vmatpush1.bf16.msra.mxu0 0
    %1420 = vmatprep.subr.bf16.mxu0 0
    %1421 = vmatpush1.bf16.msra.mxu0 0
    %1422 = vmatprep.subr.bf16.mxu0 0
    %1423 = vmatpush1.bf16.msra.mxu0 0
    %1424 = vmatprep.subr.bf16.mxu0 0
    %1425 = vmatpush1.bf16.msra.mxu0 0
    %1426 = vmatprep.subr.bf16.mxu0 0
    %1427 = vmatpush1.bf16.msra.mxu0 0
    %1428 = vmatprep.mubr.bf16.mxu0 0
    %1429 = vmatmul.mubr.bf16.gmra.mrb[0].mxu0 %v78
    %v1430 = vpop.f32.mrb[0].mxu0
    %v1431 = vadd.f32 %v1390, %v1430
    %v1432 = vpop.f32.mrb[0].mxu0
    %v1433 = vadd.f32 %v1392, %v1432
    %v1434 = vpop.f32.mrb[0].mxu0
    %v1435 = vpop.f32.mrb[0].mxu0
    %1436 = vdwg.mxu0
    %1437 = vmatprep.subr.bf16.mxu0 %v894
    %1438 = vmatpush1.bf16.msra.mxu0 %v893
    %1439 = vmatprep.subr.bf16.mxu0 %v902
    %1440 = vmatpush1.bf16.msra.mxu0 %v901
    %1441 = vmatprep.subr.bf16.mxu0 %v910
    %1442 = vmatpush1.bf16.msra.mxu0 %v909
    %1443 = vmatprep.subr.bf16.mxu0 %v918
    %1444 = vmatpush1.bf16.msra.mxu0 %v917
    %1445 = vmatprep.subr.bf16.mxu0 %v926
    %1446 = vmatpush1.bf16.msra.mxu0 %v925
    %1447 = vmatprep.subr.bf16.mxu0 %v934
    %1448 = vmatpush1.bf16.msra.mxu0 %v933
    %1449 = vmatprep.subr.bf16.mxu0 %v942
    %1450 = vmatpush1.bf16.msra.mxu0 %v941
    %1451 = vmatprep.subr.bf16.mxu0 %v950
    %1452 = vmatpush1.bf16.msra.mxu0 %v949
    %1453 = vmatprep.subr.bf16.mxu0 %v958
    %1454 = vmatpush1.bf16.msra.mxu0 %v957
    %1455 = vmatprep.subr.bf16.mxu0 %v966
    %1456 = vmatpush1.bf16.msra.mxu0 %v965
    %1457 = vmatprep.subr.bf16.mxu0 %v974
    %1458 = vmatpush1.bf16.msra.mxu0 %v973
    %1459 = vmatprep.subr.bf16.mxu0 %v982
    %1460 = vmatpush1.bf16.msra.mxu0 %v981
    %1461 = vmatprep.subr.bf16.mxu0 %v990
    %1462 = vmatpush1.bf16.msra.mxu0 %v989
    %1463 = vmatprep.subr.bf16.mxu0 %v998
    %1464 = vmatpush1.bf16.msra.mxu0 %v997
    %1465 = vmatprep.subr.bf16.mxu0 %v1006
    %1466 = vmatpush1.bf16.msra.mxu0 %v1005
    %1467 = vmatprep.subr.bf16.mxu0 %v1014
    %1468 = vmatpush1.bf16.msra.mxu0 %v1013
    %1469 = vmatprep.mubr.bf16.mxu0 %v77
    %1470 = vmatmul.mubr.bf16.gmra.mrb[0].mxu0 %v76
    %v1471 = vpop.f32.mrb[0].mxu0
    %v1472 = vadd.f32 %v292, %v1471
    %v1473 = vpop.f32.mrb[0].mxu0
    %v1474 = vadd.f32 %v296, %v1473
    %v1475 = vpop.f32.mrb[0].mxu0
    %v1476 = vpop.f32.mrb[0].mxu0
    %1477 = vdwg.mxu0
    %1478 = vmatprep.subr.bf16.mxu0 %v1022
    %1479 = vmatpush1.bf16.msra.mxu0 %v1021
    %1480 = vmatprep.subr.bf16.mxu0 %v1030
    %1481 = vmatpush1.bf16.msra.mxu0 %v1029
    %1482 = vmatprep.subr.bf16.mxu0 %v1038
    %1483 = vmatpush1.bf16.msra.mxu0 %v1037
    %1484 = vmatprep.subr.bf16.mxu0 %v1046
    %1485 = vmatpush1.bf16.msra.mxu0 %v1045
    %1486 = vmatprep.subr.bf16.mxu0 %v1054
    %1487 = vmatpush1.bf16.msra.mxu0 %v1053
    %1488 = vmatprep.subr.bf16.mxu0 %v1062
    %1489 = vmatpush1.bf16.msra.mxu0 %v1061
    %1490 = vmatprep.subr.bf16.mxu0 %v1070
    %1491 = vmatpush1.bf16.msra.mxu0 %v1069
    %1492 = vmatprep.subr.bf16.mxu0 %v1078
    %1493 = vmatpush1.bf16.msra.mxu0 %v1077
    %1494 = vmatprep.subr.bf16.mxu0 0
    %1495 = vmatpush1.bf16.msra.mxu0 0
    %1496 = vmatprep.subr.bf16.mxu0 0
    %1497 = vmatpush1.bf16.msra.mxu0 0
    %1498 = vmatprep.subr.bf16.mxu0 0
    %1499 = vmatpush1.bf16.msra.mxu0 0
    %1500 = vmatprep.subr.bf16.mxu0 0
    %1501 = vmatpush1.bf16.msra.mxu0 0
    %1502 = vmatprep.subr.bf16.mxu0 0
    %1503 = vmatpush1.bf16.msra.mxu0 0
    %1504 = vmatprep.subr.bf16.mxu0 0
    %1505 = vmatpush1.bf16.msra.mxu0 0
    %1506 = vmatprep.subr.bf16.mxu0 0
    %1507 = vmatpush1.bf16.msra.mxu0 0
    %1508 = vmatprep.subr.bf16.mxu0 0
    %1509 = vmatpush1.bf16.msra.mxu0 0
    %1510 = vmatprep.mubr.bf16.mxu0 0
    %1511 = vmatmul.mubr.bf16.gmra.mrb[0].mxu0 %v78
    %v1512 = vpop.f32.mrb[0].mxu0
    %v1513 = vadd.f32 %v1472, %v1512
    %v1514 = vpop.f32.mrb[0].mxu0
    %v1515 = vadd.f32 %v1474, %v1514
    %v1516 = vpop.f32.mrb[0].mxu0
    %v1517 = vpop.f32.mrb[0].mxu0
    %1518 = vdwg.mxu0
    %1519 = vmatprep.subr.bf16.mxu0 %v896
    %1520 = vmatpush1.bf16.msra.mxu0 %v895
    %1521 = vmatprep.subr.bf16.mxu0 %v904
    %1522 = vmatpush1.bf16.msra.mxu0 %v903
    %1523 = vmatprep.subr.bf16.mxu0 %v912
    %1524 = vmatpush1.bf16.msra.mxu0 %v911
    %1525 = vmatprep.subr.bf16.mxu0 %v920
    %1526 = vmatpush1.bf16.msra.mxu0 %v919
    %1527 = vmatprep.subr.bf16.mxu0 %v928
    %1528 = vmatpush1.bf16.msra.mxu0 %v927
    %1529 = vmatprep.subr.bf16.mxu0 %v936
    %1530 = vmatpush1.bf16.msra.mxu0 %v935
    %1531 = vmatprep.subr.bf16.mxu0 %v944
    %1532 = vmatpush1.bf16.msra.mxu0 %v943
    %1533 = vmatprep.subr.bf16.mxu0 %v952
    %1534 = vmatpush1.bf16.msra.mxu0 %v951
    %1535 = vmatprep.subr.bf16.mxu0 %v960
    %1536 = vmatpush1.bf16.msra.mxu0 %v959
    %1537 = vmatprep.subr.bf16.mxu0 %v968
    %1538 = vmatpush1.bf16.msra.mxu0 %v967
    %1539 = vmatprep.subr.bf16.mxu0 %v976
    %1540 = vmatpush1.bf16.msra.mxu0 %v975
    %1541 = vmatprep.subr.bf16.mxu0 %v984
    %1542 = vmatpush1.bf16.msra.mxu0 %v983
    %1543 = vmatprep.subr.bf16.mxu0 %v992
    %1544 = vmatpush1.bf16.msra.mxu0 %v991
    %1545 = vmatprep.subr.bf16.mxu0 %v1000
    %1546 = vmatpush1.bf16.msra.mxu0 %v999
    %1547 = vmatprep.subr.bf16.mxu0 %v1008
    %1548 = vmatpush1.bf16.msra.mxu0 %v1007
    %1549 = vmatprep.subr.bf16.mxu0 %v1016
    %1550 = vmatpush1.bf16.msra.mxu0 %v1015
    %1551 = vmatprep.mubr.bf16.mxu0 %v77
    %1552 = vmatmul.mubr.bf16.gmra.mrb[0].mxu0 %v76
    %v1553 = vpop.f32.mrb[0].mxu0
    %v1554 = vadd.f32 %v300, %v1553
    %v1555 = vpop.f32.mrb[0].mxu0
    %v1556 = vadd.f32 %v304, %v1555
    %v1557 = vpop.f32.mrb[0].mxu0
    %v1558 = vpop.f32.mrb[0].mxu0
    %1559 = vdwg.mxu0
    %1560 = vmatprep.subr.bf16.mxu0 %v1024
    %1561 = vmatpush1.bf16.msra.mxu0 %v1023
    %1562 = vmatprep.subr.bf16.mxu0 %v1032
    %1563 = vmatpush1.bf16.msra.mxu0 %v1031
    %1564 = vmatprep.subr.bf16.mxu0 %v1040
    %1565 = vmatpush1.bf16.msra.mxu0 %v1039
    %1566 = vmatprep.subr.bf16.mxu0 %v1048
    %1567 = vmatpush1.bf16.msra.mxu0 %v1047
    %1568 = vmatprep.subr.bf16.mxu0 %v1056
    %1569 = vmatpush1.bf16.msra.mxu0 %v1055
    %1570 = vmatprep.subr.bf16.mxu0 %v1064
    %1571 = vmatpush1.bf16.msra.mxu0 %v1063
    %1572 = vmatprep.subr.bf16.mxu0 %v1072
    %1573 = vmatpush1.bf16.msra.mxu0 %v1071
    %1574 = vmatprep.subr.bf16.mxu0 %v1080
    %1575 = vmatpush1.bf16.msra.mxu0 %v1079
    %1576 = vmatprep.subr.bf16.mxu0 0
    %1577 = vmatpush1.bf16.msra.mxu0 0
    %1578 = vmatprep.subr.bf16.mxu0 0
    %1579 = vmatpush1.bf16.msra.mxu0 0
    %1580 = vmatprep.subr.bf16.mxu0 0
    %1581 = vmatpush1.bf16.msra.mxu0 0
    %1582 = vmatprep.subr.bf16.mxu0 0
    %1583 = vmatpush1.bf16.msra.mxu0 0
    %1584 = vmatprep.subr.bf16.mxu0 0
    %1585 = vmatpush1.bf16.msra.mxu0 0
    %1586 = vmatprep.subr.bf16.mxu0 0
    %1587 = vmatpush1.bf16.msra.mxu0 0
    %1588 = vmatprep.subr.bf16.mxu0 0
    %1589 = vmatpush1.bf16.msra.mxu0 0
    %1590 = vmatprep.subr.bf16.mxu0 0
    %1591 = vmatpush1.bf16.msra.mxu0 0
    %1592 = vmatprep.mubr.bf16.mxu0 0
    %1593 = vmatmul.mubr.bf16.gmra.mrb[0].mxu0 %v78
    %v1594 = vpop.f32.mrb[0].mxu0
    %v1595 = vadd.f32 %v1554, %v1594
    %v1596 = vpop.f32.mrb[0].mxu0
    %v1597 = vadd.f32 %v1556, %v1596
    %v1598 = vpop.f32.mrb[0].mxu0
    %v1599 = vpop.f32.mrb[0].mxu0
    %1600 = vdwg.mxu0
    %v1601 = vmax.f32 %v1349, 0.0
    %v1602 = vmax.f32 %v1351, 0.0
    %v1603 = vmax.f32 %v1431, 0.0
    %v1604 = vmax.f32 %v1433, 0.0
    %v1605 = vmax.f32 %v1513, 0.0
    %v1606 = vmax.f32 %v1515, 0.0
    %v1607 = vmax.f32 %v1595, 0.0
    %v1608 = vmax.f32 %v1597, 0.0
    %v1609 = vpack.c.bf16 %v1601, %v1601
    %v1610 = vpack.c.bf16 %v1602, %v1602
    %v1611 = vpack.c.bf16 %v1603, %v1603
    %v1612 = vpack.c.bf16 %v1604, %v1604
    %v1613 = vpack.c.bf16 %v1605, %v1605
    %v1614 = vpack.c.bf16 %v1606, %v1606
    %v1615 = vpack.c.bf16 %v1607, %v1607
    %v1616 = vpack.c.bf16 %v1608, %v1608
    %v1617 = vld [vmem:[#allocation8] sm:$0xf]
    %v1618 = vld [vmem:[#allocation8 + $0x4] sm:$0xf]
    %v1619 = vld [vmem:[#allocation8 + $0x8] sm:$0xf]
    %v1620 = vld [vmem:[#allocation8 + $0xc] sm:$0xf]
    %v1621 = vld [vmem:[#allocation8 + $0x10] sm:$0xf]
    %v1622 = vld [vmem:[#allocation8 + $0x14] sm:$0xf]
    %v1623 = vld [vmem:[#allocation8 + $0x18] sm:$0xf]
    %v1624 = vld [vmem:[#allocation8 + $0x1c] sm:$0xf]
    %v1625 = vld [vmem:[#allocation8 + $0x20] sm:$0xf]
    %v1626 = vld [vmem:[#allocation8 + $0x24] sm:$0xf]
    %v1627 = vld [vmem:[#allocation8 + $0x28] sm:$0xf]
    %v1628 = vld [vmem:[#allocation8 + $0x2c] sm:$0xf]
    %v1629 = vld [vmem:[#allocation8 + $0x30] sm:$0xf]
    %v1630 = vld [vmem:[#allocation8 + $0x34] sm:$0xf]
    %v1631 = vld [vmem:[#allocation8 + $0x38] sm:$0xf]
    %v1632 = vld [vmem:[#allocation8 + $0x3c] sm:$0xf]
    %v1633 = vld [vmem:[#allocation8 + $0x40] sm:$0xf]
    %v1634 = vld [vmem:[#allocation8 + $0x44] sm:$0xf]
    %v1635 = vld [vmem:[#allocation8 + $0x48] sm:$0xf]
    %v1636 = vld [vmem:[#allocation8 + $0x4c] sm:$0xf]
    %v1637 = vld [vmem:[#allocation8 + $0x50] sm:$0xf]
    %v1638 = vld [vmem:[#allocation8 + $0x54] sm:$0xf]
    %v1639 = vld [vmem:[#allocation8 + $0x58] sm:$0xf]
    %v1640 = vld [vmem:[#allocation8 + $0x5c] sm:$0xf]
    %v1641 = vld [vmem:[#allocation8 + $0x60] sm:$0xf]
    %v1642 = vld [vmem:[#allocation8 + $0x64] sm:$0xf]
    %v1643 = vld [vmem:[#allocation8 + $0x68] sm:$0xf]
    %v1644 = vld [vmem:[#allocation8 + $0x6c] sm:$0xf]
    %v1645 = vld [vmem:[#allocation8 + $0x70] sm:$0xf]
    %v1646 = vld [vmem:[#allocation8 + $0x74] sm:$0xf]
    %v1647 = vld [vmem:[#allocation8 + $0x78] sm:$0xf]
    %v1648 = vld [vmem:[#allocation8 + $0x7c] sm:$0xf]
    %v1649 = vld [vmem:[#allocation8 + $0x80] sm:$0xf]
    %v1650 = vld [vmem:[#allocation8 + $0x84] sm:$0xf]
    %v1651 = vld [vmem:[#allocation8 + $0x88] sm:$0xf]
    %v1652 = vld [vmem:[#allocation8 + $0x8c] sm:$0xf]
    %v1653 = vld [vmem:[#allocation8 + $0x90] sm:$0xf]
    %v1654 = vld [vmem:[#allocation8 + $0x94] sm:$0xf]
    %v1655 = vld [vmem:[#allocation8 + $0x98] sm:$0xf]
    %v1656 = vld [vmem:[#allocation8 + $0x9c] sm:$0xf]
    %v1657 = vld [vmem:[#allocation8 + $0xa0] sm:$0xf]
    %v1658 = vld [vmem:[#allocation8 + $0xa4] sm:$0xf]
    %v1659 = vld [vmem:[#allocation8 + $0xa8] sm:$0xf]
    %v1660 = vld [vmem:[#allocation8 + $0xac] sm:$0xf]
    %v1661 = vld [vmem:[#allocation8 + $0xb0] sm:$0xf]
    %v1662 = vld [vmem:[#allocation8 + $0xb4] sm:$0xf]
    %v1663 = vld [vmem:[#allocation8 + $0xb8] sm:$0xf]
    %v1664 = vld [vmem:[#allocation8 + $0xbc] sm:$0xf]
    %v1665 = vld [vmem:[#allocation8 + $0xc0] sm:$0xf]
    %v1666 = vld [vmem:[#allocation8 + $0xc4] sm:$0xf]
    %v1667 = vld [vmem:[#allocation8 + $0xc8] sm:$0xf]
    %v1668 = vld [vmem:[#allocation8 + $0xcc] sm:$0xf]
    %v1669 = vld [vmem:[#allocation8 + $0xd0] sm:$0xf]
    %v1670 = vld [vmem:[#allocation8 + $0xd4] sm:$0xf]
    %v1671 = vld [vmem:[#allocation8 + $0xd8] sm:$0xf]
    %v1672 = vld [vmem:[#allocation8 + $0xdc] sm:$0xf]
    %v1673 = vld [vmem:[#allocation8 + $0xe0] sm:$0xf]
    %v1674 = vld [vmem:[#allocation8 + $0xe4] sm:$0xf]
    %v1675 = vld [vmem:[#allocation8 + $0xe8] sm:$0xf]
    %v1676 = vld [vmem:[#allocation8 + $0xec] sm:$0xf]
    %v1677 = vld [vmem:[#allocation8 + $0xf0] sm:$0xf]
    %v1678 = vld [vmem:[#allocation8 + $0xf4] sm:$0xf]
    %v1679 = vld [vmem:[#allocation8 + $0xf8] sm:$0xf]
    %v1680 = vld [vmem:[#allocation8 + $0xfc] sm:$0xf]
    %v1681 = vld [vmem:[#allocation8 + $0x100] sm:$0xf]
    %v1682 = vld [vmem:[#allocation8 + $0x104] sm:$0xf]
    %v1683 = vld [vmem:[#allocation8 + $0x108] sm:$0xf]
    %v1684 = vld [vmem:[#allocation8 + $0x10c] sm:$0xf]
    %v1685 = vld [vmem:[#allocation8 + $0x110] sm:$0xf]
    %v1686 = vld [vmem:[#allocation8 + $0x114] sm:$0xf]
    %v1687 = vld [vmem:[#allocation8 + $0x118] sm:$0xf]
    %v1688 = vld [vmem:[#allocation8 + $0x11c] sm:$0xf]
    %v1689 = vld [vmem:[#allocation8 + $0x120] sm:$0xf]
    %v1690 = vld [vmem:[#allocation8 + $0x124] sm:$0xf]
    %v1691 = vld [vmem:[#allocation8 + $0x128] sm:$0xf]
    %v1692 = vld [vmem:[#allocation8 + $0x12c] sm:$0xf]
    %v1693 = vld [vmem:[#allocation8 + $0x130] sm:$0xf]
    %v1694 = vld [vmem:[#allocation8 + $0x134] sm:$0xf]
    %v1695 = vld [vmem:[#allocation8 + $0x138] sm:$0xf]
    %v1696 = vld [vmem:[#allocation8 + $0x13c] sm:$0xf]
    %v1697 = vld [vmem:[#allocation8 + $0x140] sm:$0xf]
    %v1698 = vld [vmem:[#allocation8 + $0x144] sm:$0xf]
    %v1699 = vld [vmem:[#allocation8 + $0x148] sm:$0xf]
    %v1700 = vld [vmem:[#allocation8 + $0x14c] sm:$0xf]
    %v1701 = vld [vmem:[#allocation8 + $0x150] sm:$0xf]
    %v1702 = vld [vmem:[#allocation8 + $0x154] sm:$0xf]
    %v1703 = vld [vmem:[#allocation8 + $0x158] sm:$0xf]
    %v1704 = vld [vmem:[#allocation8 + $0x15c] sm:$0xf]
    %v1705 = vld [vmem:[#allocation8 + $0x160] sm:$0xf]
    %v1706 = vld [vmem:[#allocation8 + $0x164] sm:$0xf]
    %v1707 = vld [vmem:[#allocation8 + $0x168] sm:$0xf]
    %v1708 = vld [vmem:[#allocation8 + $0x16c] sm:$0xf]
    %v1709 = vld [vmem:[#allocation8 + $0x170] sm:$0xf]
    %v1710 = vld [vmem:[#allocation8 + $0x174] sm:$0xf]
    %v1711 = vld [vmem:[#allocation8 + $0x178] sm:$0xf]
    %v1712 = vld [vmem:[#allocation8 + $0x17c] sm:$0xf]
    %v1713 = vld [vmem:[#allocation8 + $0x180] sm:$0xf]
    %v1714 = vld [vmem:[#allocation8 + $0x184] sm:$0xf]
    %v1715 = vld [vmem:[#allocation8 + $0x188] sm:$0xf]
    %v1716 = vld [vmem:[#allocation8 + $0x18c] sm:$0xf]
    %v1717 = vld [vmem:[#allocation8 + $0x190] sm:$0xf]
    %v1718 = vld [vmem:[#allocation8 + $0x194] sm:$0xf]
    %v1719 = vld [vmem:[#allocation8 + $0x198] sm:$0xf]
    %v1720 = vld [vmem:[#allocation8 + $0x19c] sm:$0xf]
    %v1721 = vld [vmem:[#allocation8 + $0x1a0] sm:$0xf]
    %v1722 = vld [vmem:[#allocation8 + $0x1a4] sm:$0xf]
    %v1723 = vld [vmem:[#allocation8 + $0x1a8] sm:$0xf]
    %v1724 = vld [vmem:[#allocation8 + $0x1ac] sm:$0xf]
    %v1725 = vld [vmem:[#allocation8 + $0x1b0] sm:$0xf]
    %v1726 = vld [vmem:[#allocation8 + $0x1b4] sm:$0xf]
    %v1727 = vld [vmem:[#allocation8 + $0x1b8] sm:$0xf]
    %v1728 = vld [vmem:[#allocation8 + $0x1bc] sm:$0xf]
    %v1729 = vld [vmem:[#allocation8 + $0x1c0] sm:$0xf]
    %v1730 = vld [vmem:[#allocation8 + $0x1c4] sm:$0xf]
    %v1731 = vld [vmem:[#allocation8 + $0x1c8] sm:$0xf]
    %v1732 = vld [vmem:[#allocation8 + $0x1cc] sm:$0xf]
    %v1733 = vld [vmem:[#allocation8 + $0x1d0] sm:$0xf]
    %v1734 = vld [vmem:[#allocation8 + $0x1d4] sm:$0xf]
    %v1735 = vld [vmem:[#allocation8 + $0x1d8] sm:$0xf]
    %v1736 = vld [vmem:[#allocation8 + $0x1dc] sm:$0xf]
    %v1737 = vld [vmem:[#allocation8 + $0x1e0] sm:$0xf]
    %v1738 = vld [vmem:[#allocation8 + $0x1e4] sm:$0xf]
    %v1739 = vld [vmem:[#allocation8 + $0x1e8] sm:$0xf]
    %v1740 = vld [vmem:[#allocation8 + $0x1ec] sm:$0xf]
    %v1741 = vld [vmem:[#allocation8 + $0x1f0] sm:$0xf]
    %v1742 = vld [vmem:[#allocation8 + $0x1f4] sm:$0xf]
    %v1743 = vld [vmem:[#allocation8 + $0x1f8] sm:$0xf]
    %v1744 = vld [vmem:[#allocation8 + $0x1fc] sm:$0xf]
    %v1745 = vld [vmem:[%s4] sm:$0x1]
    %v1747 = vlaneseq
    %v1748 = vshrl.u32 %v1747, 7
    %v1749 = vsub.s32 0, %v1748
    %v1750 = vrot.slane %v1745, %v1749
    %v1880 = vunpack.c.l.b16 %v1617
    %v1881 = vunpack.c.l.b16 %v1618
    %v1882 = vunpack.c.l.b16 %v1619
    %v1883 = vunpack.c.l.b16 %v1620
    %v1884 = vunpack.c.l.b16 %v1621
    %v1885 = vunpack.c.l.b16 %v1622
    %v1886 = vunpack.c.l.b16 %v1623
    %v1887 = vunpack.c.l.b16 %v1624
    %v1888 = vunpack.c.l.b16 %v1625
    %v1889 = vunpack.c.l.b16 %v1626
    %v1890 = vunpack.c.l.b16 %v1627
    %v1891 = vunpack.c.l.b16 %v1628
    %v1892 = vunpack.c.l.b16 %v1629
    %v1893 = vunpack.c.l.b16 %v1630
    %v1894 = vunpack.c.l.b16 %v1631
    %v1895 = vunpack.c.l.b16 %v1632
    %v1896 = vunpack.c.l.b16 %v1633
    %v1897 = vunpack.c.l.b16 %v1634
    %v1898 = vunpack.c.l.b16 %v1635
    %v1899 = vunpack.c.l.b16 %v1636
    %v1900 = vunpack.c.l.b16 %v1637
    %v1901 = vunpack.c.l.b16 %v1638
    %v1902 = vunpack.c.l.b16 %v1639
    %v1903 = vunpack.c.l.b16 %v1640
    %v1904 = vunpack.c.l.b16 %v1641
    %v1905 = vunpack.c.l.b16 %v1642
    %v1906 = vunpack.c.l.b16 %v1643
    %v1907 = vunpack.c.l.b16 %v1644
    %v1908 = vunpack.c.l.b16 %v1645
    %v1909 = vunpack.c.l.b16 %v1646
    %v1910 = vunpack.c.l.b16 %v1647
    %v1911 = vunpack.c.l.b16 %v1648
    %v1912 = vunpack.c.l.b16 %v1649
    %v1913 = vunpack.c.l.b16 %v1650
    %v1914 = vunpack.c.l.b16 %v1651
    %v1915 = vunpack.c.l.b16 %v1652
    %v1916 = vunpack.c.l.b16 %v1653
    %v1917 = vunpack.c.l.b16 %v1654
    %v1918 = vunpack.c.l.b16 %v1655
    %v1919 = vunpack.c.l.b16 %v1656
    %v1920 = vunpack.c.l.b16 %v1657
    %v1921 = vunpack.c.l.b16 %v1658
    %v1922 = vunpack.c.l.b16 %v1659
    %v1923 = vunpack.c.l.b16 %v1660
    %v1924 = vunpack.c.l.b16 %v1661
    %v1925 = vunpack.c.l.b16 %v1662
    %v1926 = vunpack.c.l.b16 %v1663
    %v1927 = vunpack.c.l.b16 %v1664
    %v1928 = vunpack.c.l.b16 %v1665
    %v1929 = vunpack.c.l.b16 %v1666
    %v1930 = vunpack.c.l.b16 %v1667
    %v1931 = vunpack.c.l.b16 %v1668
    %v1932 = vunpack.c.l.b16 %v1669
    %v1933 = vunpack.c.l.b16 %v1670
    %v1934 = vunpack.c.l.b16 %v1671
    %v1935 = vunpack.c.l.b16 %v1672
    %v1936 = vunpack.c.l.b16 %v1673
    %v1937 = vunpack.c.l.b16 %v1674
    %v1938 = vunpack.c.l.b16 %v1675
    %v1939 = vunpack.c.l.b16 %v1676
    %v1940 = vunpack.c.l.b16 %v1677
    %v1941 = vunpack.c.l.b16 %v1678
    %v1942 = vunpack.c.l.b16 %v1679
    %v1943 = vunpack.c.l.b16 %v1680
    %v1944 = vunpack.c.l.b16 %v1681
    %v1945 = vunpack.c.l.b16 %v1682
    %v1946 = vunpack.c.l.b16 %v1683
    %v1947 = vunpack.c.l.b16 %v1684
    %v1948 = vunpack.c.l.b16 %v1685
    %v1949 = vunpack.c.l.b16 %v1686
    %v1950 = vunpack.c.l.b16 %v1687
    %v1951 = vunpack.c.l.b16 %v1688
    %v1952 = vunpack.c.l.b16 %v1689
    %v1953 = vunpack.c.l.b16 %v1690
    %v1954 = vunpack.c.l.b16 %v1691
    %v1955 = vunpack.c.l.b16 %v1692
    %v1956 = vunpack.c.l.b16 %v1693
    %v1957 = vunpack.c.l.b16 %v1694
    %v1958 = vunpack.c.l.b16 %v1695
    %v1959 = vunpack.c.l.b16 %v1696
    %v1960 = vunpack.c.l.b16 %v1697
    %v1961 = vunpack.c.l.b16 %v1698
    %v1962 = vunpack.c.l.b16 %v1699
    %v1963 = vunpack.c.l.b16 %v1700
    %v1964 = vunpack.c.l.b16 %v1701
    %v1965 = vunpack.c.l.b16 %v1702
    %v1966 = vunpack.c.l.b16 %v1703
    %v1967 = vunpack.c.l.b16 %v1704
    %v1968 = vunpack.c.l.b16 %v1705
    %v1969 = vunpack.c.l.b16 %v1706
    %v1970 = vunpack.c.l.b16 %v1707
    %v1971 = vunpack.c.l.b16 %v1708
    %v1972 = vunpack.c.l.b16 %v1709
    %v1973 = vunpack.c.l.b16 %v1710
    %v1974 = vunpack.c.l.b16 %v1711
    %v1975 = vunpack.c.l.b16 %v1712
    %v1976 = vunpack.c.l.b16 %v1713
    %v1977 = vunpack.c.l.b16 %v1714
    %v1978 = vunpack.c.l.b16 %v1715
    %v1979 = vunpack.c.l.b16 %v1716
    %v1980 = vunpack.c.l.b16 %v1717
    %v1981 = vunpack.c.l.b16 %v1718
    %v1982 = vunpack.c.l.b16 %v1719
    %v1983 = vunpack.c.l.b16 %v1720
    %v1984 = vunpack.c.l.b16 %v1721
    %v1985 = vunpack.c.l.b16 %v1722
    %v1986 = vunpack.c.l.b16 %v1723
    %v1987 = vunpack.c.l.b16 %v1724
    %v1988 = vunpack.c.l.b16 %v1725
    %v1989 = vunpack.c.l.b16 %v1726
    %v1990 = vunpack.c.l.b16 %v1727
    %v1991 = vunpack.c.l.b16 %v1728
    %v1992 = vunpack.c.l.b16 %v1729
    %v1993 = vunpack.c.l.b16 %v1730
    %v1994 = vunpack.c.l.b16 %v1731
    %v1995 = vunpack.c.l.b16 %v1732
    %v1996 = vunpack.c.l.b16 %v1733
    %v1997 = vunpack.c.l.b16 %v1734
    %v1998 = vunpack.c.l.b16 %v1735
    %v1999 = vunpack.c.l.b16 %v1736
    %v2000 = vunpack.c.l.b16 %v1737
    %v2001 = vunpack.c.l.b16 %v1738
    %v2002 = vunpack.c.l.b16 %v1739
    %v2003 = vunpack.c.l.b16 %v1740
    %v2004 = vunpack.c.l.b16 %v1741
    %v2005 = vunpack.c.l.b16 %v1742
    %v2006 = vunpack.c.l.b16 %v1743
    %v2007 = vunpack.c.l.b16 %v1744
    %v2008 = vpack.c.b16 %v1881, %v1880
    %v2009 = vpack.c.b16 %v1883, %v1882
    %v2010 = vpack.c.b16 %v1885, %v1884
    %v2011 = vpack.c.b16 %v1887, %v1886
    %v2012 = vpack.c.b16 %v1889, %v1888
    %v2013 = vpack.c.b16 %v1891, %v1890
    %v2014 = vpack.c.b16 %v1893, %v1892
    %v2015 = vpack.c.b16 %v1895, %v1894
    %v2016 = vpack.c.b16 %v1897, %v1896
    %v2017 = vpack.c.b16 %v1899, %v1898
    %v2018 = vpack.c.b16 %v1901, %v1900
    %v2019 = vpack.c.b16 %v1903, %v1902
    %v2020 = vpack.c.b16 %v1905, %v1904
    %v2021 = vpack.c.b16 %v1907, %v1906
    %v2022 = vpack.c.b16 %v1909, %v1908
    %v2023 = vpack.c.b16 %v1911, %v1910
    %v2024 = vpack.c.b16 %v1913, %v1912
    %v2025 = vpack.c.b16 %v1915, %v1914
    %v2026 = vpack.c.b16 %v1917, %v1916
    %v2027 = vpack.c.b16 %v1919, %v1918
    %v2028 = vpack.c.b16 %v1921, %v1920
    %v2029 = vpack.c.b16 %v1923, %v1922
    %v2030 = vpack.c.b16 %v1925, %v1924
    %v2031 = vpack.c.b16 %v1927, %v1926
    %v2032 = vpack.c.b16 %v1929, %v1928
    %v2033 = vpack.c.b16 %v1931, %v1930
    %v2034 = vpack.c.b16 %v1933, %v1932
    %v2035 = vpack.c.b16 %v1935, %v1934
    %v2036 = vpack.c.b16 %v1937, %v1936
    %v2037 = vpack.c.b16 %v1939, %v1938
    %v2038 = vpack.c.b16 %v1941, %v1940
    %v2039 = vpack.c.b16 %v1943, %v1942
    %v2040 = vpack.c.b16 %v1945, %v1944
    %v2041 = vpack.c.b16 %v1947, %v1946
    %v2042 = vpack.c.b16 %v1949, %v1948
    %v2043 = vpack.c.b16 %v1951, %v1950
    %v2044 = vpack.c.b16 %v1953, %v1952
    %v2045 = vpack.c.b16 %v1955, %v1954
    %v2046 = vpack.c.b16 %v1957, %v1956
    %v2047 = vpack.c.b16 %v1959, %v1958
    %v2048 = vpack.c.b16 %v1961, %v1960
    %v2049 = vpack.c.b16 %v1963, %v1962
    %v2050 = vpack.c.b16 %v1965, %v1964
    %v2051 = vpack.c.b16 %v1967, %v1966
    %v2052 = vpack.c.b16 %v1969, %v1968
    %v2053 = vpack.c.b16 %v1971, %v1970
    %v2054 = vpack.c.b16 %v1973, %v1972
    %v2055 = vpack.c.b16 %v1975, %v1974
    %v2056 = vpack.c.b16 %v1977, %v1976
    %v2057 = vpack.c.b16 %v1979, %v1978
    %v2058 = vpack.c.b16 %v1981, %v1980
    %v2059 = vpack.c.b16 %v1983, %v1982
    %v2060 = vpack.c.b16 %v1985, %v1984
    %v2061 = vpack.c.b16 %v1987, %v1986
    %v2062 = vpack.c.b16 %v1989, %v1988
    %v2063 = vpack.c.b16 %v1991, %v1990
    %v2064 = vpack.c.b16 %v1993, %v1992
    %v2065 = vpack.c.b16 %v1995, %v1994
    %v2066 = vpack.c.b16 %v1997, %v1996
    %v2067 = vpack.c.b16 %v1999, %v1998
    %v2068 = vpack.c.b16 %v2001, %v2000
    %v2069 = vpack.c.b16 %v2003, %v2002
    %v2070 = vpack.c.b16 %v2005, %v2004
    %v2071 = vpack.c.b16 %v2007, %v2006
    %2136 = vmatprep.subr.bf16.mxu0 0
    %2137 = vmatpush1.bf16.msra.mxu0 %v2008
    %2138 = vmatprep.subr.bf16.mxu0 0
    %2139 = vmatpush1.bf16.msra.mxu0 %v2009
    %2140 = vmatprep.subr.bf16.mxu0 0
    %2141 = vmatpush1.bf16.msra.mxu0 %v2010
    %2142 = vmatprep.subr.bf16.mxu0 0
    %2143 = vmatpush1.bf16.msra.mxu0 %v2011
    %2144 = vmatprep.subr.bf16.mxu0 0
    %2145 = vmatpush1.bf16.msra.mxu0 %v2012
    %2146 = vmatprep.subr.bf16.mxu0 0
    %2147 = vmatpush1.bf16.msra.mxu0 %v2013
    %2148 = vmatprep.subr.bf16.mxu0 0
    %2149 = vmatpush1.bf16.msra.mxu0 %v2014
    %2150 = vmatprep.subr.bf16.mxu0 0
    %2151 = vmatpush1.bf16.msra.mxu0 %v2015
    %2152 = vmatprep.subr.bf16.mxu0 0
    %2153 = vmatpush1.bf16.msra.mxu0 %v2016
    %2154 = vmatprep.subr.bf16.mxu0 0
    %2155 = vmatpush1.bf16.msra.mxu0 %v2017
    %2156 = vmatprep.subr.bf16.mxu0 0
    %2157 = vmatpush1.bf16.msra.mxu0 %v2018
    %2158 = vmatprep.subr.bf16.mxu0 0
    %2159 = vmatpush1.bf16.msra.mxu0 %v2019
    %2160 = vmatprep.subr.bf16.mxu0 0
    %2161 = vmatpush1.bf16.msra.mxu0 %v2020
    %2162 = vmatprep.subr.bf16.mxu0 0
    %2163 = vmatpush1.bf16.msra.mxu0 %v2021
    %2164 = vmatprep.subr.bf16.mxu0 0
    %2165 = vmatpush1.bf16.msra.mxu0 %v2022
    %2166 = vmatprep.subr.bf16.mxu0 0
    %2167 = vmatpush1.bf16.msra.mxu0 %v2023
    %2168 = vmatprep.mubr.bf16.mxu0 %v1610
    %2169 = vmatmul.mubr.bf16.gmra.mrb[0].mxu0 %v1609
    %v2170 = vpop.f32.mrb[0].mxu0
    %v2171 = vadd.f32 %v1750, %v2170
    %v2172 = vpop.f32.mrb[0].mxu0
    %v2173 = vpop.f32.mrb[0].mxu0
    %v2174 = vpop.f32.mrb[0].mxu0
    %2175 = vdwg.mxu0
    %2176 = vmatprep.subr.bf16.mxu0 0
    %2177 = vmatpush1.bf16.msra.mxu0 %v2024
    %2178 = vmatprep.subr.bf16.mxu0 0
    %2179 = vmatpush1.bf16.msra.mxu0 %v2025
    %2180 = vmatprep.subr.bf16.mxu0 0
    %2181 = vmatpush1.bf16.msra.mxu0 %v2026
    %2182 = vmatprep.subr.bf16.mxu0 0
    %2183 = vmatpush1.bf16.msra.mxu0 %v2027
    %2184 = vmatprep.subr.bf16.mxu0 0
    %2185 = vmatpush1.bf16.msra.mxu0 %v2028
    %2186 = vmatprep.subr.bf16.mxu0 0
    %2187 = vmatpush1.bf16.msra.mxu0 %v2029
    %2188 = vmatprep.subr.bf16.mxu0 0
    %2189 = vmatpush1.bf16.msra.mxu0 %v2030
    %2190 = vmatprep.subr.bf16.mxu0 0
    %2191 = vmatpush1.bf16.msra.mxu0 %v2031
    %2192 = vmatprep.subr.bf16.mxu0 0
    %2193 = vmatpush1.bf16.msra.mxu0 %v2032
    %2194 = vmatprep.subr.bf16.mxu0 0
    %2195 = vmatpush1.bf16.msra.mxu0 %v2033
    %2196 = vmatprep.subr.bf16.mxu0 0
    %2197 = vmatpush1.bf16.msra.mxu0 %v2034
    %2198 = vmatprep.subr.bf16.mxu0 0
    %2199 = vmatpush1.bf16.msra.mxu0 %v2035
    %2200 = vmatprep.subr.bf16.mxu0 0
    %2201 = vmatpush1.bf16.msra.mxu0 %v2036
    %2202 = vmatprep.subr.bf16.mxu0 0
    %2203 = vmatpush1.bf16.msra.mxu0 %v2037
    %2204 = vmatprep.subr.bf16.mxu0 0
    %2205 = vmatpush1.bf16.msra.mxu0 %v2038
    %2206 = vmatprep.subr.bf16.mxu0 0
    %2207 = vmatpush1.bf16.msra.mxu0 %v2039
    %2208 = vmatprep.mubr.bf16.mxu0 %v1612
    %2209 = vmatmul.mubr.bf16.gmra.mrb[0].mxu0 %v1611
    %v2210 = vpop.f32.mrb[0].mxu0
    %v2211 = vadd.f32 %v2171, %v2210
    %v2212 = vpop.f32.mrb[0].mxu0
    %v2213 = vpop.f32.mrb[0].mxu0
    %v2214 = vpop.f32.mrb[0].mxu0
    %2215 = vdwg.mxu0
    %2216 = vmatprep.subr.bf16.mxu0 0
    %2217 = vmatpush1.bf16.msra.mxu0 %v2040
    %2218 = vmatprep.subr.bf16.mxu0 0
    %2219 = vmatpush1.bf16.msra.mxu0 %v2041
    %2220 = vmatprep.subr.bf16.mxu0 0
    %2221 = vmatpush1.bf16.msra.mxu0 %v2042
    %2222 = vmatprep.subr.bf16.mxu0 0
    %2223 = vmatpush1.bf16.msra.mxu0 %v2043
    %2224 = vmatprep.subr.bf16.mxu0 0
    %2225 = vmatpush1.bf16.msra.mxu0 %v2044
    %2226 = vmatprep.subr.bf16.mxu0 0
    %2227 = vmatpush1.bf16.msra.mxu0 %v2045
    %2228 = vmatprep.subr.bf16.mxu0 0
    %2229 = vmatpush1.bf16.msra.mxu0 %v2046
    %2230 = vmatprep.subr.bf16.mxu0 0
    %2231 = vmatpush1.bf16.msra.mxu0 %v2047
    %2232 = vmatprep.subr.bf16.mxu0 0
    %2233 = vmatpush1.bf16.msra.mxu0 %v2048
    %2234 = vmatprep.subr.bf16.mxu0 0
    %2235 = vmatpush1.bf16.msra.mxu0 %v2049
    %2236 = vmatprep.subr.bf16.mxu0 0
    %2237 = vmatpush1.bf16.msra.mxu0 %v2050
    %2238 = vmatprep.subr.bf16.mxu0 0
    %2239 = vmatpush1.bf16.msra.mxu0 %v2051
    %2240 = vmatprep.subr.bf16.mxu0 0
    %2241 = vmatpush1.bf16.msra.mxu0 %v2052
    %2242 = vmatprep.subr.bf16.mxu0 0
    %2243 = vmatpush1.bf16.msra.mxu0 %v2053
    %2244 = vmatprep.subr.bf16.mxu0 0
    %2245 = vmatpush1.bf16.msra.mxu0 %v2054
    %2246 = vmatprep.subr.bf16.mxu0 0
    %2247 = vmatpush1.bf16.msra.mxu0 %v2055
    %2248 = vmatprep.mubr.bf16.mxu0 %v1614
    %2249 = vmatmul.mubr.bf16.gmra.mrb[0].mxu0 %v1613
    %v2250 = vpop.f32.mrb[0].mxu0
    %v2251 = vadd.f32 %v2211, %v2250
    %v2252 = vpop.f32.mrb[0].mxu0
    %v2253 = vpop.f32.mrb[0].mxu0
    %v2254 = vpop.f32.mrb[0].mxu0
    %2255 = vdwg.mxu0
    %2256 = vmatprep.subr.bf16.mxu0 0
    %2257 = vmatpush1.bf16.msra.mxu0 %v2056
    %2258 = vmatprep.subr.bf16.mxu0 0
    %2259 = vmatpush1.bf16.msra.mxu0 %v2057
    %2260 = vmatprep.subr.bf16.mxu0 0
    %2261 = vmatpush1.bf16.msra.mxu0 %v2058
    %2262 = vmatprep.subr.bf16.mxu0 0
    %2263 = vmatpush1.bf16.msra.mxu0 %v2059
    %2264 = vmatprep.subr.bf16.mxu0 0
    %2265 = vmatpush1.bf16.msra.mxu0 %v2060
    %2266 = vmatprep.subr.bf16.mxu0 0
    %2267 = vmatpush1.bf16.msra.mxu0 %v2061
    %2268 = vmatprep.subr.bf16.mxu0 0
    %2269 = vmatpush1.bf16.msra.mxu0 %v2062
    %2270 = vmatprep.subr.bf16.mxu0 0
    %2271 = vmatpush1.bf16.msra.mxu0 %v2063
    %2272 = vmatprep.subr.bf16.mxu0 0
    %2273 = vmatpush1.bf16.msra.mxu0 %v2064
    %2274 = vmatprep.subr.bf16.mxu0 0
    %2275 = vmatpush1.bf16.msra.mxu0 %v2065
    %2276 = vmatprep.subr.bf16.mxu0 0
    %2277 = vmatpush1.bf16.msra.mxu0 %v2066
    %2278 = vmatprep.subr.bf16.mxu0 0
    %2279 = vmatpush1.bf16.msra.mxu0 %v2067
    %2280 = vmatprep.subr.bf16.mxu0 0
    %2281 = vmatpush1.bf16.msra.mxu0 %v2068
    %2282 = vmatprep.subr.bf16.mxu0 0
    %2283 = vmatpush1.bf16.msra.mxu0 %v2069
    %2284 = vmatprep.subr.bf16.mxu0 0
    %2285 = vmatpush1.bf16.msra.mxu0 %v2070
    %2286 = vmatprep.subr.bf16.mxu0 0
    %2287 = vmatpush1.bf16.msra.mxu0 %v2071
    %2288 = vmatprep.mubr.bf16.mxu0 %v1616
    %2289 = vmatmul.mubr.bf16.gmra.mrb[0].mxu0 %v1615
    %v2290 = vpop.f32.mrb[0].mxu0
    %v2291 = vadd.f32 %v2251, %v2290
    %v2292 = vpop.f32.mrb[0].mxu0
    %v2293 = vpop.f32.mrb[0].mxu0
    %v2294 = vpop.f32.mrb[0].mxu0
    %2295 = vdwg.mxu0
    %v2296 = vxor.u32 %v2291, 2147483648
    %v2297 = vmul.f32 %v2296, 1.442695
    %v2298 = vpow.pop %v2297
    %v2299 = vadd.f32 %v2298, 1.0
    %v2300 = vrcp.pop %v2299
    %v2301 = vmul.f32 1.0, %v2300
    %2302 = vst [vmem:[#allocation10] sm:$0xff] %v2301
    // Predicated region
    $region38: #{mlp_forward.1} parent=1 // pred_check
      _
    $region39: #{mlp_forward.1} parent=1 // pred_check_branch
      %2304 = sbr.rel (0) target = $region41
    $region40: #{mlp_forward.1} parent=1 // pred_region
      %s2306 = ssub.s32 128, 128
      %2307 = vsyncadd [#allocation4], %s2306
      %s2309 = sshll.u32 [#allocation10], 4
      %s2310 = int_to_ptr.vmem [resolvable:$true] %s2309
      %2312 = dma.vmem_to_hbm [thread:$0]  %s2310, 128, %s5, [#allocation4]
    $region41: #{mlp_forward.1} parent=1 // pred_fallthru
      _
    // Predicated region
    $region42: #{mlp_forward.1} parent=1 // pred_check
      _
    $region43: #{mlp_forward.1} parent=1 // pred_check_branch
      %2314 = sbr.rel (0) target = $region45
    $region44: #{mlp_forward.1} parent=1 // pred_region
      %2315 = dma.done [#allocation4], 128
    $region45: #{mlp_forward.1} parent=1 // pred_fallthru
      _
    %2316 = vsyncpa [#allocation3], 1
    %2317 = vsyncpa [#allocation6], 1
    %2318 = vsyncpa [#allocation9], 1
    %2319 = vsyncpa [#allocation4], 1

</llo_original>
